<compile_context>
chip_gen: v7x
topology: tpu7x:2x2x1
jax: 0.10.0
libtpu: 0.0.40
codegen_flags: <defaults>
</compile_context>

<pallas_src>
import jax
import jax.numpy as jnp
from jax.experimental import pallas as pl
from jax.experimental.pallas import tpu as pltpu

IN_FEATURES = 28 * 28      # 784 — kept unpadded (block dim == full array dim)
NUM_CLASSES = 10
OUT_PADDED = 128           # lane-dense output width for fc4 (no vst.msk)


def _round_up(n, m):
    return ((n + m - 1) // m) * m


def _mlp_kernel(x_ref,
                w1_ref, b1_ref,
                w2_ref, b2_ref,
                w3_ref, b3_ref,
                w4_ref, b4_ref,
                o_ref):
    # In-kernel f32 -> bf16 cast (VPU slot has slack while the MXU runs).
    h = x_ref[...].astype(jnp.bfloat16)
    # fc1 + ReLU  (bf16 operands, f32 accumulation on the MXU)
    h = jnp.dot(h, w1_ref[...], preferred_element_type=jnp.float32)
    h = jnp.maximum(h + b1_ref[...].astype(jnp.float32), 0.0).astype(jnp.bfloat16)
    # fc2 + ReLU
    h = jnp.dot(h, w2_ref[...], preferred_element_type=jnp.float32)
    h = jnp.maximum(h + b2_ref[...].astype(jnp.float32), 0.0).astype(jnp.bfloat16)
    # fc3 + ReLU
    h = jnp.dot(h, w3_ref[...], preferred_element_type=jnp.float32)
    h = jnp.maximum(h + b3_ref[...].astype(jnp.float32), 0.0).astype(jnp.bfloat16)
    # fc4 (no activation); padded-to-128 output -> unmasked lane-dense bf16 store
    h = jnp.dot(h, w4_ref[...], preferred_element_type=jnp.float32)
    o_ref[...] = (h + b4_ref[...].astype(jnp.float32)).astype(o_ref.dtype)


def _choose_tm(B, tm_max=512):
    # 16-row alignment: bf16 intermediates pack two rows per sublane.
    tm = min(tm_max, _round_up(B, 16))
    # Prefer >= 2 grid tiles so v7x's second TensorCore isn't idle.
    if B > 16 and _round_up(B, tm) // tm < 2:
        tm = _round_up((B + 1) // 2, 16)
    return tm


def simple_fashion_net(x, params, *, tm_max=512):
    """x: (B, 1, 28, 28) or (B, 784) float32.  Returns (B, 10) f32 logits."""
    x2d = x.reshape(-1, IN_FEATURES)
    B = x2d.shape[0]
    tm = _choose_tm(B, tm_max)
    bp = _round_up(B, tm)
    if bp != B:
        # Batch-rows-only zero pad (no dtype cast, no K pad).
        x2d = jnp.pad(x2d, ((0, bp - B), (0, 0)))

    def _resident(arr):
        # Same block index every grid step -> fetched once, stays VMEM-resident.
        return pl.BlockSpec(arr.shape, lambda i: (0, 0))

    weights = (params["w1"], params["b1"],
               params["w2"], params["b2"],
               params["w3"], params["b3"],
               params["w4"], params["b4"])

    out = pl.pallas_call(
        _mlp_kernel,
        grid=(bp // tm,),
        out_shape=jax.ShapeDtypeStruct((bp, OUT_PADDED), jnp.bfloat16),
        in_specs=[pl.BlockSpec((tm, IN_FEATURES), lambda i: (i, 0))]
                 + [_resident(w) for w in weights],
        out_specs=pl.BlockSpec((tm, OUT_PADDED), lambda i: (i, 0)),
        compiler_params=pltpu.CompilerParams(
            dimension_semantics=("parallel",),   # shard batch tiles across TCs
            vmem_limit_bytes=32 << 20,           # covers tm=512 tiles; fits v7x
        ),
    )(x2d, *weights)
    return out[:B, :NUM_CLASSES].astype(jnp.float32)


def init_params(key):
    """torch nn.Linear-style init; weights stored transposed as (in, out) bf16."""
    dims = [(IN_FEATURES, 512), (512, 256), (256, 128), (128, NUM_CLASSES)]
    params = {}
    for i, (fan_in, fan_out) in enumerate(dims, start=1):
        key, kw, kb = jax.random.split(key, 3)
        bound = 1.0 / jnp.sqrt(fan_in)
        w = jax.random.uniform(kw, (fan_in, fan_out), jnp.float32, -bound, bound)
        b = jax.random.uniform(kb, (1, fan_out), jnp.float32, -bound, bound)
        params[f"w{i}"] = w.astype(jnp.bfloat16)
        params[f"b{i}"] = b.astype(jnp.bfloat16)
    # Zero-pad only fc4 N (10 -> 128): math is unchanged, output store is
    # lane-dense.  fc1 K stays at 784 (no pad needed any more).
    params["w4"] = jnp.pad(params["w4"], ((0, 0), (0, OUT_PADDED - NUM_CLASSES)))
    params["b4"] = jnp.pad(params["b4"], ((0, 0), (0, OUT_PADDED - NUM_CLASSES)))
    return params


def _reference(x, params):
    """Pure-JAX reference mirroring the kernel's bf16 casts + f32 accumulation."""
    h = x.reshape(-1, IN_FEATURES).astype(jnp.bfloat16)
    h = jnp.dot(h, params["w1"], preferred_element_type=jnp.float32)
    h = jnp.maximum(h + params["b1"].astype(jnp.float32), 0.0).astype(jnp.bfloat16)
    h = jnp.dot(h, params["w2"], preferred_element_type=jnp.float32)
    h = jnp.maximum(h + params["b2"].astype(jnp.float32), 0.0).astype(jnp.bfloat16)
    h = jnp.dot(h, params["w3"], preferred_element_type=jnp.float32)
    h = jnp.maximum(h + params["b3"].astype(jnp.float32), 0.0).astype(jnp.bfloat16)
    h = jnp.dot(h, params["w4"][:, :NUM_CLASSES], preferred_element_type=jnp.float32)
    h = h + params["b4"][:, :NUM_CLASSES].astype(jnp.float32)
    # Kernel writes bf16 logits; mirror that quantization.
    return h.astype(jnp.bfloat16).astype(jnp.float32)


if __name__ == "__main__":
    key = jax.random.PRNGKey(0)
    key, kx = jax.random.split(key)
    params = init_params(key)

    # Small FashionMNIST-like batch, NCHW like the PyTorch module.
    x = jax.random.normal(kx, (8, 1, 28, 28), jnp.float32)

    out = jax.block_until_ready(simple_fashion_net(x, params))
    ref = _reference(x, params)

    assert out.shape == (8, NUM_CLASSES), out.shape
    err = jnp.max(jnp.abs(out - ref))
    assert jnp.allclose(out, ref, atol=2e-2, rtol=2e-2), f"mismatch, max err {err}"
    print("KERNEL_OK")
</pallas_src>

<mosaic_0001>
module attributes {stable_mosaic.version = 11 : i64} {
  func.func @_mlp_kernel(%arg0: i32, %arg1: memref<16x784xf32, #tpu.memory_space<vmem>>, %arg2: memref<784x512xbf16, #tpu.memory_space<vmem>>, %arg3: memref<1x512xbf16, #tpu.memory_space<vmem>>, %arg4: memref<512x256xbf16, #tpu.memory_space<vmem>>, %arg5: memref<1x256xbf16, #tpu.memory_space<vmem>>, %arg6: memref<256x128xbf16, #tpu.memory_space<vmem>>, %arg7: memref<1x128xbf16, #tpu.memory_space<vmem>>, %arg8: memref<128x128xbf16, #tpu.memory_space<vmem>>, %arg9: memref<1x128xbf16, #tpu.memory_space<vmem>>, %arg10: memref<16x128xbf16, #tpu.memory_space<vmem>>) attributes {dimension_semantics = [#tpu.dimension_semantics<parallel>], iteration_bounds = array<i64: 1>, scalar_prefetch = 0 : i64, scratch_operands = 0 : i64, tpu.core_type = #tpu.core_type<tc>, window_params = [{transform_indices = @transform_0, window_bounds = array<i64: 16, 784>}, {pipeline_mode = #tpu.pipeline_mode<synchronous>, transform_indices = @transform_1, window_bounds = array<i64: 784, 512>}, {pipeline_mode = #tpu.pipeline_mode<synchronous>, transform_indices = @transform_2, window_bounds = array<i64: 1, 512>}, {pipeline_mode = #tpu.pipeline_mode<synchronous>, transform_indices = @transform_3, window_bounds = array<i64: 512, 256>}, {pipeline_mode = #tpu.pipeline_mode<synchronous>, transform_indices = @transform_4, window_bounds = array<i64: 1, 256>}, {pipeline_mode = #tpu.pipeline_mode<synchronous>, transform_indices = @transform_5, window_bounds = array<i64: 256, 128>}, {pipeline_mode = #tpu.pipeline_mode<synchronous>, transform_indices = @transform_6, window_bounds = array<i64: 1, 128>}, {pipeline_mode = #tpu.pipeline_mode<synchronous>, transform_indices = @transform_7, window_bounds = array<i64: 128, 128>}, {pipeline_mode = #tpu.pipeline_mode<synchronous>, transform_indices = @transform_8, window_bounds = array<i64: 1, 128>}, {transform_indices = @transform_9, window_bounds = array<i64: 16, 128>}]} {
    %c0 = arith.constant 0 : index
    %c0_0 = arith.constant 0 : index
    %0 = vector.load %arg1[%c0, %c0_0] : memref<16x784xf32, #tpu.memory_space<vmem>>, vector<16x784xf32>
    %1 = arith.truncf %0 : vector<16x784xf32> to vector<16x784xbf16>
    %c0_1 = arith.constant 0 : index
    %c0_2 = arith.constant 0 : index
    %2 = vector.load %arg2[%c0_1, %c0_2] : memref<784x512xbf16, #tpu.memory_space<vmem>>, vector<784x512xbf16>
    %cst = arith.constant dense<0.000000e+00> : vector<16x512xf32>
    %3 = tpu.matmul %1, %2, %cst {dimension_numbers = #tpu.dot_dimension_numbers<[1], [0], [0], [1], [0, 0, 1, 1], [], []>} : vector<16x784xbf16>, vector<784x512xbf16>, vector<16x512xf32> -> vector<16x512xf32>
    %c0_3 = arith.constant 0 : index
    %c0_4 = arith.constant 0 : index
    %4 = vector.load %arg3[%c0_3, %c0_4] : memref<1x512xbf16, #tpu.memory_space<vmem>>, vector<1x512xbf16>
    %5 = arith.extf %4 : vector<1x512xbf16> to vector<1x512xf32>
    %6 = vector.broadcast %5 : vector<1x512xf32> to vector<16x512xf32>
    %7 = arith.addf %3, %6 : vector<16x512xf32>
    %cst_5 = arith.constant 0.000000e+00 : f32
    %8 = vector.broadcast %cst_5 : f32 to vector<16x512xf32>
    %9 = arith.maximumf %7, %8 : vector<16x512xf32>
    %10 = arith.truncf %9 : vector<16x512xf32> to vector<16x512xbf16>
    %c0_6 = arith.constant 0 : index
    %c0_7 = arith.constant 0 : index
    %11 = vector.load %arg4[%c0_6, %c0_7] : memref<512x256xbf16, #tpu.memory_space<vmem>>, vector<512x256xbf16>
    %cst_8 = arith.constant dense<0.000000e+00> : vector<16x256xf32>
    %12 = tpu.matmul %10, %11, %cst_8 {dimension_numbers = #tpu.dot_dimension_numbers<[1], [0], [0], [1], [0, 0, 1, 1], [], []>} : vector<16x512xbf16>, vector<512x256xbf16>, vector<16x256xf32> -> vector<16x256xf32>
    %c0_9 = arith.constant 0 : index
    %c0_10 = arith.constant 0 : index
    %13 = vector.load %arg5[%c0_9, %c0_10] : memref<1x256xbf16, #tpu.memory_space<vmem>>, vector<1x256xbf16>
    %14 = arith.extf %13 : vector<1x256xbf16> to vector<1x256xf32>
    %15 = vector.broadcast %14 : vector<1x256xf32> to vector<16x256xf32>
    %16 = arith.addf %12, %15 : vector<16x256xf32>
    %cst_11 = arith.constant 0.000000e+00 : f32
    %17 = vector.broadcast %cst_11 : f32 to vector<16x256xf32>
    %18 = arith.maximumf %16, %17 : vector<16x256xf32>
    %19 = arith.truncf %18 : vector<16x256xf32> to vector<16x256xbf16>
    %c0_12 = arith.constant 0 : index
    %c0_13 = arith.constant 0 : index
    %20 = vector.load %arg6[%c0_12, %c0_13] : memref<256x128xbf16, #tpu.memory_space<vmem>>, vector<256x128xbf16>
    %cst_14 = arith.constant dense<0.000000e+00> : vector<16x128xf32>
    %21 = tpu.matmul %19, %20, %cst_14 {dimension_numbers = #tpu.dot_dimension_numbers<[1], [0], [0], [1], [0, 0, 1, 1], [], []>} : vector<16x256xbf16>, vector<256x128xbf16>, vector<16x128xf32> -> vector<16x128xf32>
    %c0_15 = arith.constant 0 : index
    %c0_16 = arith.constant 0 : index
    %22 = vector.load %arg7[%c0_15, %c0_16] : memref<1x128xbf16, #tpu.memory_space<vmem>>, vector<1x128xbf16>
    %23 = arith.extf %22 : vector<1x128xbf16> to vector<1x128xf32>
    %24 = vector.broadcast %23 : vector<1x128xf32> to vector<16x128xf32>
    %25 = arith.addf %21, %24 : vector<16x128xf32>
    %cst_17 = arith.constant 0.000000e+00 : f32
    %26 = vector.broadcast %cst_17 : f32 to vector<16x128xf32>
    %27 = arith.maximumf %25, %26 : vector<16x128xf32>
    %28 = arith.truncf %27 : vector<16x128xf32> to vector<16x128xbf16>
    %c0_18 = arith.constant 0 : index
    %c0_19 = arith.constant 0 : index
    %29 = vector.load %arg8[%c0_18, %c0_19] : memref<128x128xbf16, #tpu.memory_space<vmem>>, vector<128x128xbf16>
    %cst_20 = arith.constant dense<0.000000e+00> : vector<16x128xf32>
    %30 = tpu.matmul %28, %29, %cst_20 {dimension_numbers = #tpu.dot_dimension_numbers<[1], [0], [0], [1], [0, 0, 1, 1], [], []>} : vector<16x128xbf16>, vector<128x128xbf16>, vector<16x128xf32> -> vector<16x128xf32>
    %c0_21 = arith.constant 0 : index
    %c0_22 = arith.constant 0 : index
    %31 = vector.load %arg9[%c0_21, %c0_22] : memref<1x128xbf16, #tpu.memory_space<vmem>>, vector<1x128xbf16>
    %32 = arith.extf %31 : vector<1x128xbf16> to vector<1x128xf32>
    %33 = vector.broadcast %32 : vector<1x128xf32> to vector<16x128xf32>
    %34 = arith.addf %30, %33 : vector<16x128xf32>
    %35 = arith.truncf %34 : vector<16x128xf32> to vector<16x128xbf16>
    %c0_23 = arith.constant 0 : index
    %c0_24 = arith.constant 0 : index
    %36 = vector.load %arg10[%c0_23, %c0_24] : memref<16x128xbf16, #tpu.memory_space<vmem>>, vector<16x128xbf16>
    tpu.vector_store %arg10[%c0_23, %c0_24], %35 {strides = array<i32>} : memref<16x128xbf16, #tpu.memory_space<vmem>>, vector<16x128xbf16>,
    return
  }
  func.func @transform_0(%arg0: i32) -> (i32, i32) {
    %c0_i32 = arith.constant 0 : i32
    %c0_i32_0 = arith.constant 0 : i32
    return %arg0, %c0_i32 : i32, i32
  }
  func.func @transform_1(%arg0: i32) -> (i32, i32) {
    %c0_i32 = arith.constant 0 : i32
    %c0_i32_0 = arith.constant 0 : i32
    %c0_i32_1 = arith.constant 0 : i32
    return %c0_i32, %c0_i32_0 : i32, i32
  }
  func.func @transform_2(%arg0: i32) -> (i32, i32) {
    %c0_i32 = arith.constant 0 : i32
    %c0_i32_0 = arith.constant 0 : i32
    %c0_i32_1 = arith.constant 0 : i32
    return %c0_i32, %c0_i32_0 : i32, i32
  }
  func.func @transform_3(%arg0: i32) -> (i32, i32) {
    %c0_i32 = arith.constant 0 : i32
    %c0_i32_0 = arith.constant 0 : i32
    %c0_i32_1 = arith.constant 0 : i32
    return %c0_i32, %c0_i32_0 : i32, i32
  }
  func.func @transform_4(%arg0: i32) -> (i32, i32) {
    %c0_i32 = arith.constant 0 : i32
    %c0_i32_0 = arith.constant 0 : i32
    %c0_i32_1 = arith.constant 0 : i32
    return %c0_i32, %c0_i32_0 : i32, i32
  }
  func.func @transform_5(%arg0: i32) -> (i32, i32) {
    %c0_i32 = arith.constant 0 : i32
    %c0_i32_0 = arith.constant 0 : i32
    %c0_i32_1 = arith.constant 0 : i32
    return %c0_i32, %c0_i32_0 : i32, i32
  }
  func.func @transform_6(%arg0: i32) -> (i32, i32) {
    %c0_i32 = arith.constant 0 : i32
    %c0_i32_0 = arith.constant 0 : i32
    %c0_i32_1 = arith.constant 0 : i32
    return %c0_i32, %c0_i32_0 : i32, i32
  }
  func.func @transform_7(%arg0: i32) -> (i32, i32) {
    %c0_i32 = arith.constant 0 : i32
    %c0_i32_0 = arith.constant 0 : i32
    %c0_i32_1 = arith.constant 0 : i32
    return %c0_i32, %c0_i32_0 : i32, i32
  }
  func.func @transform_8(%arg0: i32) -> (i32, i32) {
    %c0_i32 = arith.constant 0 : i32
    %c0_i32_0 = arith.constant 0 : i32
    %c0_i32_1 = arith.constant 0 : i32
    return %c0_i32, %c0_i32_0 : i32, i32
  }
  func.func @transform_9(%arg0: i32) -> (i32, i32) {
    %c0_i32 = arith.constant 0 : i32
    %c0_i32_0 = arith.constant 0 : i32
    return %arg0, %c0_i32 : i32, i32
  }
}

</mosaic_0001>

<llo_original>
// kernel: tpu_custom_call.1
$region0: #{tpu_custom_call.1}
  #allocation0 [shape = 'u32[]', space=smem, size = 0x4, offset = 0x4, fixed_abs, tag = 'smem constant byte address 0x4 - core index']
  #allocation1 [shape = 'u32[144,128]{1,0:T(1,128)}', space=vmem, size = 0x12000, scoped, tag = 'internal scratch']
  %s0 = inlined_call_operand.hbm [shape: f32[16,784], index: 0, kind: input, shape index: {}]
  %s1 = inlined_call_operand.hbm [shape: bf16[784,512], index: 1, kind: input, shape index: {}]
  %s2 = inlined_call_operand.vmem [shape: bf16[1,512], index: 2, kind: input, shape index: {}]
  %s3 = inlined_call_operand.hbm [shape: bf16[512,256], index: 3, kind: input, shape index: {}]
  %s4 = inlined_call_operand.vmem [shape: bf16[1,256], index: 4, kind: input, shape index: {}]
  %s5 = inlined_call_operand.hbm [shape: bf16[256,128], index: 5, kind: input, shape index: {}]
  %s6 = inlined_call_operand.vmem [shape: bf16[1,128], index: 6, kind: input, shape index: {}]
  %s7 = inlined_call_operand.hbm [shape: bf16[128,128], index: 7, kind: input, shape index: {}]
  %s8 = inlined_call_operand.vmem [shape: bf16[1,128], index: 8, kind: input, shape index: {}]
  %s9 = inlined_call_operand.hbm [shape: bf16[16,128], index: 9, kind: output, shape index: {}]
  %s10 = sld [smem:[#allocation0]]
  $region66: #{tpu_custom_call.1} parent=0
    _
  %s12 = ssub.s32 1, %s10
  %s13 = scalar_select 0, %s12, %s10
  $region1: #{tpu_custom_call.1} parent=0
    #allocation2 [shape = 'u8[57344]{0}', space=vmem, size = 0xe000, scoped, tag = 'input window, operand 0, single buffered']
    #allocation3 [shape = 's32[1]{0}', space=sflag, size = 0x4, scoped, tag = 'scoped memory for tpu_custom_call.1']
    #allocation4 [shape = 's32[1]{0}', space=sflag, size = 0x4, scoped, tag = 'scoped memory for tpu_custom_call.1']
    #allocation5 [shape = 'u8[802816]{0}', space=vmem, size = 0xc4000, scoped, tag = 'input window, operand 1, single buffered']
    #allocation6 [shape = 's32[1]{0}', space=sflag, size = 0x4, scoped, tag = 'scoped memory for tpu_custom_call.1']
    #allocation7 [shape = 'u8[262144]{0}', space=vmem, size = 0x40000, scoped, tag = 'input window, operand 3, single buffered']
    #allocation8 [shape = 'u8[65536]{0}', space=vmem, size = 0x10000, scoped, tag = 'input window, operand 5, single buffered']
    #allocation9 [shape = 's32[1]{0}', space=sflag, size = 0x4, scoped, tag = 'scoped memory for tpu_custom_call.1']
    #allocation10 [shape = 'u8[32768]{0}', space=vmem, size = 0x8000, scoped, tag = 'input window, operand 7, single buffered']
    #allocation11 [shape = 'u8[4096]{0}', space=vmem, size = 0x1000, scoped, tag = 'output window, operand 0, single buffered']
    %14 = vsyncpa [#allocation3], 0
    %15 = vsyncpa [#allocation6], 0
    %16 = vsyncpa [#allocation9], 0
    %17 = vsyncpa [#allocation4], 0
    // Predicated region
    $region2: #{tpu_custom_call.1} parent=1 // pred_check
      _
    $region3: #{tpu_custom_call.1} parent=1 // pred_check_branch
      %19 = sbr.rel (0) target = $region5
    $region4: #{tpu_custom_call.1} parent=1 // pred_region
      %s21 = ssub.s32 1792, 1792
      %22 = vsyncadd [#allocation3], %s21
      %s23 = sshll.u32 [#allocation2], 4
      %s24 = int_to_ptr.vmem [resolvable:$true] %s23
      %29 = dma.hbm_to_vmem [thread:$0]  %s0, 1792, %s24, [#allocation3], 896, 896, 56
    $region5: #{tpu_custom_call.1} parent=1 // pred_fallthru
      _
    // Predicated region
    $region6: #{tpu_custom_call.1} parent=1 // pred_check
      _
    $region7: #{tpu_custom_call.1} parent=1 // pred_check_branch
      %31 = sbr.rel (0) target = $region9
    $region8: #{tpu_custom_call.1} parent=1 // pred_region
      %s33 = ssub.s32 25088, 25088
      %34 = vsyncadd [#allocation6], %s33
      %s35 = sshll.u32 [#allocation5], 4
      %s36 = int_to_ptr.vmem [resolvable:$true] %s35
      %41 = dma.hbm_to_vmem [thread:$0]  %s1, 25088, %s36, [#allocation6], 256, 256, 16
    $region9: #{tpu_custom_call.1} parent=1 // pred_fallthru
      _
    // Predicated region
    $region10: #{tpu_custom_call.1} parent=1 // pred_check
      _
    $region11: #{tpu_custom_call.1} parent=1 // pred_check_branch
      %43 = sbr.rel (0) target = $region13
    $region12: #{tpu_custom_call.1} parent=1 // pred_region
      _
    $region13: #{tpu_custom_call.1} parent=1 // pred_fallthru
      _
    // Predicated region
    $region14: #{tpu_custom_call.1} parent=1 // pred_check
      _
    $region15: #{tpu_custom_call.1} parent=1 // pred_check_branch
      %45 = sbr.rel (0) target = $region17
    $region16: #{tpu_custom_call.1} parent=1 // pred_region
      %s47 = ssub.s32 8192, 8192
      %48 = vsyncadd [#allocation6], %s47
      %s49 = sshll.u32 [#allocation7], 4
      %s50 = int_to_ptr.vmem [resolvable:$true] %s49
      %55 = dma.hbm_to_vmem [thread:$0]  %s3, 8192, %s50, [#allocation6], 128, 128, 8
    $region17: #{tpu_custom_call.1} parent=1 // pred_fallthru
      _
    // Predicated region
    $region18: #{tpu_custom_call.1} parent=1 // pred_check
      _
    $region19: #{tpu_custom_call.1} parent=1 // pred_check_branch
      %57 = sbr.rel (0) target = $region21
    $region20: #{tpu_custom_call.1} parent=1 // pred_region
      _
    $region21: #{tpu_custom_call.1} parent=1 // pred_fallthru
      _
    // Predicated region
    $region22: #{tpu_custom_call.1} parent=1 // pred_check
      _
    $region23: #{tpu_custom_call.1} parent=1 // pred_check_branch
      %59 = sbr.rel (0) target = $region25
    $region24: #{tpu_custom_call.1} parent=1 // pred_region
      %s61 = ssub.s32 2048, 2048
      %62 = vsyncadd [#allocation9], %s61
      %s63 = sshll.u32 [#allocation8], 4
      %s64 = int_to_ptr.vmem [resolvable:$true] %s63
      %69 = dma.hbm_to_vmem [thread:$0]  %s5, 2048, %s64, [#allocation9], 64, 64, 4
    $region25: #{tpu_custom_call.1} parent=1 // pred_fallthru
      _
    // Predicated region
    $region26: #{tpu_custom_call.1} parent=1 // pred_check
      _
    $region27: #{tpu_custom_call.1} parent=1 // pred_check_branch
      %71 = sbr.rel (0) target = $region29
    $region28: #{tpu_custom_call.1} parent=1 // pred_region
      _
    $region29: #{tpu_custom_call.1} parent=1 // pred_fallthru
      _
    // Predicated region
    $region30: #{tpu_custom_call.1} parent=1 // pred_check
      _
    $region31: #{tpu_custom_call.1} parent=1 // pred_check_branch
      %73 = sbr.rel (0) target = $region33
    $region32: #{tpu_custom_call.1} parent=1 // pred_region
      %s75 = ssub.s32 1024, 1024
      %76 = vsyncadd [#allocation9], %s75
      %s77 = sshll.u32 [#allocation10], 4
      %s78 = int_to_ptr.vmem [resolvable:$true] %s77
      %83 = dma.hbm_to_vmem [thread:$0]  %s7, 1024, %s78, [#allocation9], 64, 64, 4
    $region33: #{tpu_custom_call.1} parent=1 // pred_fallthru
      _
    // Predicated region
    $region34: #{tpu_custom_call.1} parent=1 // pred_check
      _
    $region35: #{tpu_custom_call.1} parent=1 // pred_check_branch
      %85 = sbr.rel (0) target = $region37
    $region36: #{tpu_custom_call.1} parent=1 // pred_region
      _
    $region37: #{tpu_custom_call.1} parent=1 // pred_fallthru
      _
    // Predicated region
    $region38: #{tpu_custom_call.1} parent=1 // pred_check
      _
    $region39: #{tpu_custom_call.1} parent=1 // pred_check_branch
      %87 = sbr.rel (0) target = $region41
    $region40: #{tpu_custom_call.1} parent=1 // pred_region
      %88 = dma.done [#allocation3], 1792
    $region41: #{tpu_custom_call.1} parent=1 // pred_fallthru
      _
    // Predicated region
    $region42: #{tpu_custom_call.1} parent=1 // pred_check
      _
    $region43: #{tpu_custom_call.1} parent=1 // pred_check_branch
      %90 = sbr.rel (0) target = $region45
    $region44: #{tpu_custom_call.1} parent=1 // pred_region
      %91 = dma.done [#allocation6], 25088
    $region45: #{tpu_custom_call.1} parent=1 // pred_fallthru
      _
    // Predicated region
    $region46: #{tpu_custom_call.1} parent=1 // pred_check
      _
    $region47: #{tpu_custom_call.1} parent=1 // pred_check_branch
      %93 = sbr.rel (0) target = $region49
    $region48: #{tpu_custom_call.1} parent=1 // pred_region
      %94 = dma.done [#allocation6], 8192
    $region49: #{tpu_custom_call.1} parent=1 // pred_fallthru
      _
    // Predicated region
    $region50: #{tpu_custom_call.1} parent=1 // pred_check
      _
    $region51: #{tpu_custom_call.1} parent=1 // pred_check_branch
      %96 = sbr.rel (0) target = $region53
    $region52: #{tpu_custom_call.1} parent=1 // pred_region
      %97 = dma.done [#allocation9], 2048
    $region53: #{tpu_custom_call.1} parent=1 // pred_fallthru
      _
    // Predicated region
    $region54: #{tpu_custom_call.1} parent=1 // pred_check
      _
    $region55: #{tpu_custom_call.1} parent=1 // pred_check_branch
      %99 = sbr.rel (0) target = $region57
    $region56: #{tpu_custom_call.1} parent=1 // pred_region
      %100 = dma.done [#allocation9], 1024
    $region57: #{tpu_custom_call.1} parent=1 // pred_fallthru
      _
    %v102 = vld [vmem:[#allocation2] sm:$0xff]
    %v103 = vld [vmem:[#allocation2 + $0x8] sm:$0xff]
    %v104 = vld [vmem:[#allocation2 + $0x10] sm:$0xff]
    %v105 = vld [vmem:[#allocation2 + $0x18] sm:$0xff]
    %v106 = vld [vmem:[#allocation2 + $0x20] sm:$0xff]
    %v107 = vld [vmem:[#allocation2 + $0x28] sm:$0xff]
    %v108 = vld [vmem:[#allocation2 + $0x30] sm:$0xff]
    %v109 = vld [vmem:[#allocation2 + $0x38] sm:$0xff]
    %v110 = vld [vmem:[#allocation2 + $0x40] sm:$0xff]
    %v111 = vld [vmem:[#allocation2 + $0x48] sm:$0xff]
    %v112 = vld [vmem:[#allocation2 + $0x50] sm:$0xff]
    %v113 = vld [vmem:[#allocation2 + $0x58] sm:$0xff]
    %v114 = vld [vmem:[#allocation2 + $0x60] sm:$0xff]
    %v115 = vld [vmem:[#allocation2 + $0x68] sm:$0xff]
    %v116 = vpack.c.bf16 %v109, %v102
    %v117 = vpack.c.bf16 %v110, %v103
    %v118 = vpack.c.bf16 %v111, %v104
    %v119 = vpack.c.bf16 %v112, %v105
    %v120 = vpack.c.bf16 %v113, %v106
    %v121 = vpack.c.bf16 %v114, %v107
    %v122 = vpack.c.bf16 %v115, %v108
    %v123 = vld [vmem:[#allocation5] sm:$0xff]
    %v124 = vld [vmem:[#allocation5 + $0x8] sm:$0xff]
    %v125 = vld [vmem:[#allocation5 + $0x10] sm:$0xff]
    %v126 = vld [vmem:[#allocation5 + $0x18] sm:$0xff]
    %v127 = vld [vmem:[#allocation5 + $0x20] sm:$0xff]
    %v128 = vld [vmem:[#allocation5 + $0x28] sm:$0xff]
    %v129 = vld [vmem:[#allocation5 + $0x30] sm:$0xff]
    %v130 = vld [vmem:[#allocation5 + $0x38] sm:$0xff]
    %v131 = vld [vmem:[#allocation5 + $0x40] sm:$0xff]
    %v132 = vld [vmem:[#allocation5 + $0x48] sm:$0xff]
    %v133 = vld [vmem:[#allocation5 + $0x50] sm:$0xff]
    %v134 = vld [vmem:[#allocation5 + $0x58] sm:$0xff]
    %v135 = vld [vmem:[#allocation5 + $0x60] sm:$0xff]
    %v136 = vld [vmem:[#allocation5 + $0x68] sm:$0xff]
    %v137 = vld [vmem:[#allocation5 + $0x70] sm:$0xff]
    %v138 = vld [vmem:[#allocation5 + $0x78] sm:$0xff]
    %v139 = vld [vmem:[#allocation5 + $0x80] sm:$0xff]
    %v140 = vld [vmem:[#allocation5 + $0x88] sm:$0xff]
    %v141 = vld [vmem:[#allocation5 + $0x90] sm:$0xff]
    %v142 = vld [vmem:[#allocation5 + $0x98] sm:$0xff]
    %v143 = vld [vmem:[#allocation5 + $0xa0] sm:$0xff]
    %v144 = vld [vmem:[#allocation5 + $0xa8] sm:$0xff]
    %v145 = vld [vmem:[#allocation5 + $0xb0] sm:$0xff]
    %v146 = vld [vmem:[#allocation5 + $0xb8] sm:$0xff]
    %v147 = vld [vmem:[#allocation5 + $0xc0] sm:$0xff]
    %v148 = vld [vmem:[#allocation5 + $0xc8] sm:$0xff]
    %v149 = vld [vmem:[#allocation5 + $0xd0] sm:$0xff]
    %v150 = vld [vmem:[#allocation5 + $0xd8] sm:$0xff]
    %v151 = vld [vmem:[#allocation5 + $0xe0] sm:$0xff]
    %v152 = vld [vmem:[#allocation5 + $0xe8] sm:$0xff]
    %v153 = vld [vmem:[#allocation5 + $0xf0] sm:$0xff]
    %v154 = vld [vmem:[#allocation5 + $0xf8] sm:$0xff]
    %v155 = vld [vmem:[#allocation5 + $0x100] sm:$0xff]
    %v156 = vld [vmem:[#allocation5 + $0x108] sm:$0xff]
    %v157 = vld [vmem:[#allocation5 + $0x110] sm:$0xff]
    %v158 = vld [vmem:[#allocation5 + $0x118] sm:$0xff]
    %v159 = vld [vmem:[#allocation5 + $0x120] sm:$0xff]
    %v160 = vld [vmem:[#allocation5 + $0x128] sm:$0xff]
    %v161 = vld [vmem:[#allocation5 + $0x130] sm:$0xff]
    %v162 = vld [vmem:[#allocation5 + $0x138] sm:$0xff]
    %v163 = vld [vmem:[#allocation5 + $0x140] sm:$0xff]
    %v164 = vld [vmem:[#allocation5 + $0x148] sm:$0xff]
    %v165 = vld [vmem:[#allocation5 + $0x150] sm:$0xff]
    %v166 = vld [vmem:[#allocation5 + $0x158] sm:$0xff]
    %v167 = vld [vmem:[#allocation5 + $0x160] sm:$0xff]
    %v168 = vld [vmem:[#allocation5 + $0x168] sm:$0xff]
    %v169 = vld [vmem:[#allocation5 + $0x170] sm:$0xff]
    %v170 = vld [vmem:[#allocation5 + $0x178] sm:$0xff]
    %v171 = vld [vmem:[#allocation5 + $0x180] sm:$0xff]
    %v172 = vld [vmem:[#allocation5 + $0x188] sm:$0xff]
    %v173 = vld [vmem:[#allocation5 + $0x190] sm:$0xff]
    %v174 = vld [vmem:[#allocation5 + $0x198] sm:$0xff]
    %v175 = vld [vmem:[#allocation5 + $0x1a0] sm:$0xff]
    %v176 = vld [vmem:[#allocation5 + $0x1a8] sm:$0xff]
    %v177 = vld [vmem:[#allocation5 + $0x1b0] sm:$0xff]
    %v178 = vld [vmem:[#allocation5 + $0x1b8] sm:$0xff]
    %v179 = vld [vmem:[#allocation5 + $0x1c0] sm:$0xff]
    %v180 = vld [vmem:[#allocation5 + $0x1c8] sm:$0xff]
    %v181 = vld [vmem:[#allocation5 + $0x1d0] sm:$0xff]
    %v182 = vld [vmem:[#allocation5 + $0x1d8] sm:$0xff]
    %v183 = vld [vmem:[#allocation5 + $0x1e0] sm:$0xff]
    %v184 = vld [vmem:[#allocation5 + $0x1e8] sm:$0xff]
    %v185 = vld [vmem:[#allocation5 + $0x1f0] sm:$0xff]
    %v186 = vld [vmem:[#allocation5 + $0x1f8] sm:$0xff]
    %v187 = vld [vmem:[#allocation5 + $0x200] sm:$0xff]
    %v188 = vld [vmem:[#allocation5 + $0x208] sm:$0xff]
    %v189 = vld [vmem:[#allocation5 + $0x210] sm:$0xff]
    %v190 = vld [vmem:[#allocation5 + $0x218] sm:$0xff]
    %v191 = vld [vmem:[#allocation5 + $0x220] sm:$0xff]
    %v192 = vld [vmem:[#allocation5 + $0x228] sm:$0xff]
    %v193 = vld [vmem:[#allocation5 + $0x230] sm:$0xff]
    %v194 = vld [vmem:[#allocation5 + $0x238] sm:$0xff]
    %v195 = vld [vmem:[#allocation5 + $0x240] sm:$0xff]
    %v196 = vld [vmem:[#allocation5 + $0x248] sm:$0xff]
    %v197 = vld [vmem:[#allocation5 + $0x250] sm:$0xff]
    %v198 = vld [vmem:[#allocation5 + $0x258] sm:$0xff]
    %v199 = vld [vmem:[#allocation5 + $0x260] sm:$0xff]
    %v200 = vld [vmem:[#allocation5 + $0x268] sm:$0xff]
    %v201 = vld [vmem:[#allocation5 + $0x270] sm:$0xff]
    %v202 = vld [vmem:[#allocation5 + $0x278] sm:$0xff]
    %v203 = vld [vmem:[#allocation5 + $0x280] sm:$0xff]
    %v204 = vld [vmem:[#allocation5 + $0x288] sm:$0xff]
    %v205 = vld [vmem:[#allocation5 + $0x290] sm:$0xff]
    %v206 = vld [vmem:[#allocation5 + $0x298] sm:$0xff]
    %v207 = vld [vmem:[#allocation5 + $0x2a0] sm:$0xff]
    %v208 = vld [vmem:[#allocation5 + $0x2a8] sm:$0xff]
    %v209 = vld [vmem:[#allocation5 + $0x2b0] sm:$0xff]
    %v210 = vld [vmem:[#allocation5 + $0x2b8] sm:$0xff]
    %v211 = vld [vmem:[#allocation5 + $0x2c0] sm:$0xff]
    %v212 = vld [vmem:[#allocation5 + $0x2c8] sm:$0xff]
    %v213 = vld [vmem:[#allocation5 + $0x2d0] sm:$0xff]
    %v214 = vld [vmem:[#allocation5 + $0x2d8] sm:$0xff]
    %v215 = vld [vmem:[#allocation5 + $0x2e0] sm:$0xff]
    %v216 = vld [vmem:[#allocation5 + $0x2e8] sm:$0xff]
    %v217 = vld [vmem:[#allocation5 + $0x2f0] sm:$0xff]
    %v218 = vld [vmem:[#allocation5 + $0x2f8] sm:$0xff]
    %v219 = vld [vmem:[#allocation5 + $0x300] sm:$0xff]
    %v220 = vld [vmem:[#allocation5 + $0x308] sm:$0xff]
    %v221 = vld [vmem:[#allocation5 + $0x310] sm:$0xff]
    %v222 = vld [vmem:[#allocation5 + $0x318] sm:$0xff]
    %v223 = vld [vmem:[#allocation5 + $0x320] sm:$0xff]
    %v224 = vld [vmem:[#allocation5 + $0x328] sm:$0xff]
    %v225 = vld [vmem:[#allocation5 + $0x330] sm:$0xff]
    %v226 = vld [vmem:[#allocation5 + $0x338] sm:$0xff]
    %v227 = vld [vmem:[#allocation5 + $0x340] sm:$0xff]
    %v228 = vld [vmem:[#allocation5 + $0x348] sm:$0xff]
    %v229 = vld [vmem:[#allocation5 + $0x350] sm:$0xff]
    %v230 = vld [vmem:[#allocation5 + $0x358] sm:$0xff]
    %v231 = vld [vmem:[#allocation5 + $0x360] sm:$0xff]
    %v232 = vld [vmem:[#allocation5 + $0x368] sm:$0xff]
    %v233 = vld [vmem:[#allocation5 + $0x370] sm:$0xff]
    %v234 = vld [vmem:[#allocation5 + $0x378] sm:$0xff]
    %v235 = vld [vmem:[#allocation5 + $0x380] sm:$0xff]
    %v236 = vld [vmem:[#allocation5 + $0x388] sm:$0xff]
    %v237 = vld [vmem:[#allocation5 + $0x390] sm:$0xff]
    %v238 = vld [vmem:[#allocation5 + $0x398] sm:$0xff]
    %v239 = vld [vmem:[#allocation5 + $0x3a0] sm:$0xff]
    %v240 = vld [vmem:[#allocation5 + $0x3a8] sm:$0xff]
    %v241 = vld [vmem:[#allocation5 + $0x3b0] sm:$0xff]
    %v242 = vld [vmem:[#allocation5 + $0x3b8] sm:$0xff]
    %v243 = vld [vmem:[#allocation5 + $0x3c0] sm:$0xff]
    %v244 = vld [vmem:[#allocation5 + $0x3c8] sm:$0xff]
    %v245 = vld [vmem:[#allocation5 + $0x3d0] sm:$0xff]
    %v246 = vld [vmem:[#allocation5 + $0x3d8] sm:$0xff]
    %v247 = vld [vmem:[#allocation5 + $0x3e0] sm:$0xff]
    %v248 = vld [vmem:[#allocation5 + $0x3e8] sm:$0xff]
    %v249 = vld [vmem:[#allocation5 + $0x3f0] sm:$0xff]
    %v250 = vld [vmem:[#allocation5 + $0x3f8] sm:$0xff]
    %v251 = vld [vmem:[#allocation5 + $0x400] sm:$0xff]
    %v252 = vld [vmem:[#allocation5 + $0x408] sm:$0xff]
    %v253 = vld [vmem:[#allocation5 + $0x410] sm:$0xff]
    %v254 = vld [vmem:[#allocation5 + $0x418] sm:$0xff]
    %v255 = vld [vmem:[#allocation5 + $0x420] sm:$0xff]
    %v256 = vld [vmem:[#allocation5 + $0x428] sm:$0xff]
    %v257 = vld [vmem:[#allocation5 + $0x430] sm:$0xff]
    %v258 = vld [vmem:[#allocation5 + $0x438] sm:$0xff]
    %v259 = vld [vmem:[#allocation5 + $0x440] sm:$0xff]
    %v260 = vld [vmem:[#allocation5 + $0x448] sm:$0xff]
    %v261 = vld [vmem:[#allocation5 + $0x450] sm:$0xff]
    %v262 = vld [vmem:[#allocation5 + $0x458] sm:$0xff]
    %v263 = vld [vmem:[#allocation5 + $0x460] sm:$0xff]
    %v264 = vld [vmem:[#allocation5 + $0x468] sm:$0xff]
    %v265 = vld [vmem:[#allocation5 + $0x470] sm:$0xff]
    %v266 = vld [vmem:[#allocation5 + $0x478] sm:$0xff]
    %v267 = vld [vmem:[#allocation5 + $0x480] sm:$0xff]
    %v268 = vld [vmem:[#allocation5 + $0x488] sm:$0xff]
    %v269 = vld [vmem:[#allocation5 + $0x490] sm:$0xff]
    %v270 = vld [vmem:[#allocation5 + $0x498] sm:$0xff]
    %v271 = vld [vmem:[#allocation5 + $0x4a0] sm:$0xff]
    %v272 = vld [vmem:[#allocation5 + $0x4a8] sm:$0xff]
    %v273 = vld [vmem:[#allocation5 + $0x4b0] sm:$0xff]
    %v274 = vld [vmem:[#allocation5 + $0x4b8] sm:$0xff]
    %v275 = vld [vmem:[#allocation5 + $0x4c0] sm:$0xff]
    %v276 = vld [vmem:[#allocation5 + $0x4c8] sm:$0xff]
    %v277 = vld [vmem:[#allocation5 + $0x4d0] sm:$0xff]
    %v278 = vld [vmem:[#allocation5 + $0x4d8] sm:$0xff]
    %v279 = vld [vmem:[#allocation5 + $0x4e0] sm:$0xff]
    %v280 = vld [vmem:[#allocation5 + $0x4e8] sm:$0xff]
    %v281 = vld [vmem:[#allocation5 + $0x4f0] sm:$0xff]
    %v282 = vld [vmem:[#allocation5 + $0x4f8] sm:$0xff]
    %v283 = vld [vmem:[#allocation5 + $0x500] sm:$0xff]
    %v284 = vld [vmem:[#allocation5 + $0x508] sm:$0xff]
    %v285 = vld [vmem:[#allocation5 + $0x510] sm:$0xff]
    %v286 = vld [vmem:[#allocation5 + $0x518] sm:$0xff]
    %v287 = vld [vmem:[#allocation5 + $0x520] sm:$0xff]
    %v288 = vld [vmem:[#allocation5 + $0x528] sm:$0xff]
    %v289 = vld [vmem:[#allocation5 + $0x530] sm:$0xff]
    %v290 = vld [vmem:[#allocation5 + $0x538] sm:$0xff]
    %v291 = vld [vmem:[#allocation5 + $0x540] sm:$0xff]
    %v292 = vld [vmem:[#allocation5 + $0x548] sm:$0xff]
    %v293 = vld [vmem:[#allocation5 + $0x550] sm:$0xff]
    %v294 = vld [vmem:[#allocation5 + $0x558] sm:$0xff]
    %v295 = vld [vmem:[#allocation5 + $0x560] sm:$0xff]
    %v296 = vld [vmem:[#allocation5 + $0x568] sm:$0xff]
    %v297 = vld [vmem:[#allocation5 + $0x570] sm:$0xff]
    %v298 = vld [vmem:[#allocation5 + $0x578] sm:$0xff]
    %v299 = vld [vmem:[#allocation5 + $0x580] sm:$0xff]
    %v300 = vld [vmem:[#allocation5 + $0x588] sm:$0xff]
    %v301 = vld [vmem:[#allocation5 + $0x590] sm:$0xff]
    %v302 = vld [vmem:[#allocation5 + $0x598] sm:$0xff]
    %v303 = vld [vmem:[#allocation5 + $0x5a0] sm:$0xff]
    %v304 = vld [vmem:[#allocation5 + $0x5a8] sm:$0xff]
    %v305 = vld [vmem:[#allocation5 + $0x5b0] sm:$0xff]
    %v306 = vld [vmem:[#allocation5 + $0x5b8] sm:$0xff]
    %v307 = vld [vmem:[#allocation5 + $0x5c0] sm:$0xff]
    %v308 = vld [vmem:[#allocation5 + $0x5c8] sm:$0xff]
    %v309 = vld [vmem:[#allocation5 + $0x5d0] sm:$0xff]
    %v310 = vld [vmem:[#allocation5 + $0x5d8] sm:$0xff]
    %v311 = vld [vmem:[#allocation5 + $0x5e0] sm:$0xff]
    %v312 = vld [vmem:[#allocation5 + $0x5e8] sm:$0xff]
    %v313 = vld [vmem:[#allocation5 + $0x5f0] sm:$0xff]
    %v314 = vld [vmem:[#allocation5 + $0x5f8] sm:$0xff]
    %v315 = vld [vmem:[#allocation5 + $0x600] sm:$0xff]
    %v316 = vld [vmem:[#allocation5 + $0x608] sm:$0xff]
    %v317 = vld [vmem:[#allocation5 + $0x610] sm:$0xff]
    %v318 = vld [vmem:[#allocation5 + $0x618] sm:$0xff]
    %v319 = vld [vmem:[%s2] sm:$0xf]
    %v320 = vunpack.c.l.bf16 %v319
    %v322 = vlaneseq
    %v323 = vshrl.u32 %v322, 7
    %v324 = vsub.s32 0, %v323
    %v325 = vrot.slane %v320, %v324
    %v326 = vlaneseq
    %v327 = vshrl.u32 %v326, 7
    %v328 = vsub.s32 2, %v327
    %v329 = vrot.slane %v320, %v328
    %v330 = vlaneseq
    %v331 = vshrl.u32 %v330, 7
    %v332 = vsub.s32 4, %v331
    %v333 = vrot.slane %v320, %v332
    %v334 = vlaneseq
    %v335 = vshrl.u32 %v334, 7
    %v336 = vsub.s32 6, %v335
    %v337 = vrot.slane %v320, %v336
    %v342 = vlaneseq
    %v343 = vshrl.u32 %v342, 7
    %v344 = vsub.s32 0, %v343
    %v345 = vrot.slane %v325, %v344
    %v346 = vlaneseq
    %v347 = vshrl.u32 %v346, 7
    %v348 = vsub.s32 0, %v347
    %v349 = vrot.slane %v329, %v348
    %v350 = vlaneseq
    %v351 = vshrl.u32 %v350, 7
    %v352 = vsub.s32 0, %v351
    %v353 = vrot.slane %v333, %v352
    %v354 = vlaneseq
    %v355 = vshrl.u32 %v354, 7
    %v356 = vsub.s32 0, %v355
    %v357 = vrot.slane %v337, %v356
    %v554 = vunpack.c.l.b16 %v123
    %v555 = vunpack.c.h.b16 %v123
    %v556 = vunpack.c.l.b16 %v124
    %v557 = vunpack.c.h.b16 %v124
    %v558 = vunpack.c.l.b16 %v125
    %v559 = vunpack.c.h.b16 %v125
    %v560 = vunpack.c.l.b16 %v126
    %v561 = vunpack.c.h.b16 %v126
    %v562 = vunpack.c.l.b16 %v127
    %v563 = vunpack.c.h.b16 %v127
    %v564 = vunpack.c.l.b16 %v128
    %v565 = vunpack.c.h.b16 %v128
    %v566 = vunpack.c.l.b16 %v129
    %v567 = vunpack.c.h.b16 %v129
    %v568 = vunpack.c.l.b16 %v130
    %v569 = vunpack.c.h.b16 %v130
    %v570 = vunpack.c.l.b16 %v131
    %v571 = vunpack.c.h.b16 %v131
    %v572 = vunpack.c.l.b16 %v132
    %v573 = vunpack.c.h.b16 %v132
    %v574 = vunpack.c.l.b16 %v133
    %v575 = vunpack.c.h.b16 %v133
    %v576 = vunpack.c.l.b16 %v134
    %v577 = vunpack.c.h.b16 %v134
    %v578 = vunpack.c.l.b16 %v135
    %v579 = vunpack.c.h.b16 %v135
    %v580 = vunpack.c.l.b16 %v136
    %v581 = vunpack.c.h.b16 %v136
    %v582 = vunpack.c.l.b16 %v137
    %v583 = vunpack.c.h.b16 %v137
    %v584 = vunpack.c.l.b16 %v138
    %v585 = vunpack.c.h.b16 %v138
    %v586 = vunpack.c.l.b16 %v139
    %v587 = vunpack.c.h.b16 %v139
    %v588 = vunpack.c.l.b16 %v140
    %v589 = vunpack.c.h.b16 %v140
    %v590 = vunpack.c.l.b16 %v141
    %v591 = vunpack.c.h.b16 %v141
    %v592 = vunpack.c.l.b16 %v142
    %v593 = vunpack.c.h.b16 %v142
    %v594 = vunpack.c.l.b16 %v143
    %v595 = vunpack.c.h.b16 %v143
    %v596 = vunpack.c.l.b16 %v144
    %v597 = vunpack.c.h.b16 %v144
    %v598 = vunpack.c.l.b16 %v145
    %v599 = vunpack.c.h.b16 %v145
    %v600 = vunpack.c.l.b16 %v146
    %v601 = vunpack.c.h.b16 %v146
    %v602 = vunpack.c.l.b16 %v147
    %v603 = vunpack.c.h.b16 %v147
    %v604 = vunpack.c.l.b16 %v148
    %v605 = vunpack.c.h.b16 %v148
    %v606 = vunpack.c.l.b16 %v149
    %v607 = vunpack.c.h.b16 %v149
    %v608 = vunpack.c.l.b16 %v150
    %v609 = vunpack.c.h.b16 %v150
    %v610 = vunpack.c.l.b16 %v151
    %v611 = vunpack.c.h.b16 %v151
    %v612 = vunpack.c.l.b16 %v152
    %v613 = vunpack.c.h.b16 %v152
    %v614 = vunpack.c.l.b16 %v153
    %v615 = vunpack.c.h.b16 %v153
    %v616 = vunpack.c.l.b16 %v154
    %v617 = vunpack.c.h.b16 %v154
    %v618 = vunpack.c.l.b16 %v155
    %v619 = vunpack.c.h.b16 %v155
    %v620 = vunpack.c.l.b16 %v156
    %v621 = vunpack.c.h.b16 %v156
    %v622 = vunpack.c.l.b16 %v157
    %v623 = vunpack.c.h.b16 %v157
    %v624 = vunpack.c.l.b16 %v158
    %v625 = vunpack.c.h.b16 %v158
    %v626 = vunpack.c.l.b16 %v159
    %v627 = vunpack.c.h.b16 %v159
    %v628 = vunpack.c.l.b16 %v160
    %v629 = vunpack.c.h.b16 %v160
    %v630 = vunpack.c.l.b16 %v161
    %v631 = vunpack.c.h.b16 %v161
    %v632 = vunpack.c.l.b16 %v162
    %v633 = vunpack.c.h.b16 %v162
    %v634 = vunpack.c.l.b16 %v163
    %v635 = vunpack.c.h.b16 %v163
    %v636 = vunpack.c.l.b16 %v164
    %v637 = vunpack.c.h.b16 %v164
    %v638 = vunpack.c.l.b16 %v165
    %v639 = vunpack.c.h.b16 %v165
    %v640 = vunpack.c.l.b16 %v166
    %v641 = vunpack.c.h.b16 %v166
    %v642 = vunpack.c.l.b16 %v167
    %v643 = vunpack.c.h.b16 %v167
    %v644 = vunpack.c.l.b16 %v168
    %v645 = vunpack.c.h.b16 %v168
    %v646 = vunpack.c.l.b16 %v169
    %v647 = vunpack.c.h.b16 %v169
    %v648 = vunpack.c.l.b16 %v170
    %v649 = vunpack.c.h.b16 %v170
    %v650 = vunpack.c.l.b16 %v171
    %v651 = vunpack.c.h.b16 %v171
    %v652 = vunpack.c.l.b16 %v172
    %v653 = vunpack.c.h.b16 %v172
    %v654 = vunpack.c.l.b16 %v173
    %v655 = vunpack.c.h.b16 %v173
    %v656 = vunpack.c.l.b16 %v174
    %v657 = vunpack.c.h.b16 %v174
    %v658 = vunpack.c.l.b16 %v175
    %v659 = vunpack.c.h.b16 %v175
    %v660 = vunpack.c.l.b16 %v176
    %v661 = vunpack.c.h.b16 %v176
    %v662 = vunpack.c.l.b16 %v177
    %v663 = vunpack.c.h.b16 %v177
    %v664 = vunpack.c.l.b16 %v178
    %v665 = vunpack.c.h.b16 %v178
    %v666 = vunpack.c.l.b16 %v179
    %v667 = vunpack.c.h.b16 %v179
    %v668 = vunpack.c.l.b16 %v180
    %v669 = vunpack.c.h.b16 %v180
    %v670 = vunpack.c.l.b16 %v181
    %v671 = vunpack.c.h.b16 %v181
    %v672 = vunpack.c.l.b16 %v182
    %v673 = vunpack.c.h.b16 %v182
    %v674 = vunpack.c.l.b16 %v183
    %v675 = vunpack.c.h.b16 %v183
    %v676 = vunpack.c.l.b16 %v184
    %v677 = vunpack.c.h.b16 %v184
    %v678 = vunpack.c.l.b16 %v185
    %v679 = vunpack.c.h.b16 %v185
    %v680 = vunpack.c.l.b16 %v186
    %v681 = vunpack.c.h.b16 %v186
    %v682 = vunpack.c.l.b16 %v187
    %v683 = vunpack.c.h.b16 %v187
    %v684 = vunpack.c.l.b16 %v188
    %v685 = vunpack.c.h.b16 %v188
    %v686 = vunpack.c.l.b16 %v189
    %v687 = vunpack.c.h.b16 %v189
    %v688 = vunpack.c.l.b16 %v190
    %v689 = vunpack.c.h.b16 %v190
    %v690 = vunpack.c.l.b16 %v191
    %v691 = vunpack.c.h.b16 %v191
    %v692 = vunpack.c.l.b16 %v192
    %v693 = vunpack.c.h.b16 %v192
    %v694 = vunpack.c.l.b16 %v193
    %v695 = vunpack.c.h.b16 %v193
    %v696 = vunpack.c.l.b16 %v194
    %v697 = vunpack.c.h.b16 %v194
    %v698 = vunpack.c.l.b16 %v195
    %v699 = vunpack.c.h.b16 %v195
    %v700 = vunpack.c.l.b16 %v196
    %v701 = vunpack.c.h.b16 %v196
    %v702 = vunpack.c.l.b16 %v197
    %v703 = vunpack.c.h.b16 %v197
    %v704 = vunpack.c.l.b16 %v198
    %v705 = vunpack.c.h.b16 %v198
    %v706 = vunpack.c.l.b16 %v199
    %v707 = vunpack.c.h.b16 %v199
    %v708 = vunpack.c.l.b16 %v200
    %v709 = vunpack.c.h.b16 %v200
    %v710 = vunpack.c.l.b16 %v201
    %v711 = vunpack.c.h.b16 %v201
    %v712 = vunpack.c.l.b16 %v202
    %v713 = vunpack.c.h.b16 %v202
    %v714 = vunpack.c.l.b16 %v203
    %v715 = vunpack.c.h.b16 %v203
    %v716 = vunpack.c.l.b16 %v204
    %v717 = vunpack.c.h.b16 %v204
    %v718 = vunpack.c.l.b16 %v205
    %v719 = vunpack.c.h.b16 %v205
    %v720 = vunpack.c.l.b16 %v206
    %v721 = vunpack.c.h.b16 %v206
    %v722 = vunpack.c.l.b16 %v207
    %v723 = vunpack.c.h.b16 %v207
    %v724 = vunpack.c.l.b16 %v208
    %v725 = vunpack.c.h.b16 %v208
    %v726 = vunpack.c.l.b16 %v209
    %v727 = vunpack.c.h.b16 %v209
    %v728 = vunpack.c.l.b16 %v210
    %v729 = vunpack.c.h.b16 %v210
    %v730 = vunpack.c.l.b16 %v211
    %v731 = vunpack.c.h.b16 %v211
    %v732 = vunpack.c.l.b16 %v212
    %v733 = vunpack.c.h.b16 %v212
    %v734 = vunpack.c.l.b16 %v213
    %v735 = vunpack.c.h.b16 %v213
    %v736 = vunpack.c.l.b16 %v214
    %v737 = vunpack.c.h.b16 %v214
    %v738 = vunpack.c.l.b16 %v215
    %v739 = vunpack.c.h.b16 %v215
    %v740 = vunpack.c.l.b16 %v216
    %v741 = vunpack.c.h.b16 %v216
    %v742 = vunpack.c.l.b16 %v217
    %v743 = vunpack.c.h.b16 %v217
    %v744 = vunpack.c.l.b16 %v218
    %v745 = vunpack.c.h.b16 %v218
    %v746 = vunpack.c.l.b16 %v219
    %v747 = vunpack.c.h.b16 %v219
    %v748 = vunpack.c.l.b16 %v220
    %v749 = vunpack.c.h.b16 %v220
    %v750 = vunpack.c.l.b16 %v221
    %v751 = vunpack.c.h.b16 %v221
    %v752 = vunpack.c.l.b16 %v222
    %v753 = vunpack.c.h.b16 %v222
    %v754 = vunpack.c.l.b16 %v223
    %v755 = vunpack.c.h.b16 %v223
    %v756 = vunpack.c.l.b16 %v224
    %v757 = vunpack.c.h.b16 %v224
    %v758 = vunpack.c.l.b16 %v225
    %v759 = vunpack.c.h.b16 %v225
    %v760 = vunpack.c.l.b16 %v226
    %v761 = vunpack.c.h.b16 %v226
    %v762 = vunpack.c.l.b16 %v227
    %v763 = vunpack.c.h.b16 %v227
    %v764 = vunpack.c.l.b16 %v228
    %v765 = vunpack.c.h.b16 %v228
    %v766 = vunpack.c.l.b16 %v229
    %v767 = vunpack.c.h.b16 %v229
    %v768 = vunpack.c.l.b16 %v230
    %v769 = vunpack.c.h.b16 %v230
    %v770 = vunpack.c.l.b16 %v231
    %v771 = vunpack.c.h.b16 %v231
    %v772 = vunpack.c.l.b16 %v232
    %v773 = vunpack.c.h.b16 %v232
    %v774 = vunpack.c.l.b16 %v233
    %v775 = vunpack.c.h.b16 %v233
    %v776 = vunpack.c.l.b16 %v234
    %v777 = vunpack.c.h.b16 %v234
    %v778 = vunpack.c.l.b16 %v235
    %v779 = vunpack.c.h.b16 %v235
    %v780 = vunpack.c.l.b16 %v236
    %v781 = vunpack.c.h.b16 %v236
    %v782 = vunpack.c.l.b16 %v237
    %v783 = vunpack.c.h.b16 %v237
    %v784 = vunpack.c.l.b16 %v238
    %v785 = vunpack.c.h.b16 %v238
    %v786 = vunpack.c.l.b16 %v239
    %v787 = vunpack.c.h.b16 %v239
    %v788 = vunpack.c.l.b16 %v240
    %v789 = vunpack.c.h.b16 %v240
    %v790 = vunpack.c.l.b16 %v241
    %v791 = vunpack.c.h.b16 %v241
    %v792 = vunpack.c.l.b16 %v242
    %v793 = vunpack.c.h.b16 %v242
    %v794 = vunpack.c.l.b16 %v243
    %v795 = vunpack.c.h.b16 %v243
    %v796 = vunpack.c.l.b16 %v244
    %v797 = vunpack.c.h.b16 %v244
    %v798 = vunpack.c.l.b16 %v245
    %v799 = vunpack.c.h.b16 %v245
    %v800 = vunpack.c.l.b16 %v246
    %v801 = vunpack.c.h.b16 %v246
    %v802 = vunpack.c.l.b16 %v247
    %v803 = vunpack.c.h.b16 %v247
    %v804 = vunpack.c.l.b16 %v248
    %v805 = vunpack.c.h.b16 %v248
    %v806 = vunpack.c.l.b16 %v249
    %v807 = vunpack.c.h.b16 %v249
    %v808 = vunpack.c.l.b16 %v250
    %v809 = vunpack.c.h.b16 %v250
    %v810 = vunpack.c.l.b16 %v251
    %v811 = vunpack.c.h.b16 %v251
    %v812 = vunpack.c.l.b16 %v252
    %v813 = vunpack.c.h.b16 %v252
    %v814 = vunpack.c.l.b16 %v253
    %v815 = vunpack.c.h.b16 %v253
    %v816 = vunpack.c.l.b16 %v254
    %v817 = vunpack.c.h.b16 %v254
    %v818 = vunpack.c.l.b16 %v255
    %v819 = vunpack.c.h.b16 %v255
    %v820 = vunpack.c.l.b16 %v256
    %v821 = vunpack.c.h.b16 %v256
    %v822 = vunpack.c.l.b16 %v257
    %v823 = vunpack.c.h.b16 %v257
    %v824 = vunpack.c.l.b16 %v258
    %v825 = vunpack.c.h.b16 %v258
    %v826 = vunpack.c.l.b16 %v259
    %v827 = vunpack.c.h.b16 %v259
    %v828 = vunpack.c.l.b16 %v260
    %v829 = vunpack.c.h.b16 %v260
    %v830 = vunpack.c.l.b16 %v261
    %v831 = vunpack.c.h.b16 %v261
    %v832 = vunpack.c.l.b16 %v262
    %v833 = vunpack.c.h.b16 %v262
    %v834 = vunpack.c.l.b16 %v263
    %v835 = vunpack.c.h.b16 %v263
    %v836 = vunpack.c.l.b16 %v264
    %v837 = vunpack.c.h.b16 %v264
    %v838 = vunpack.c.l.b16 %v265
    %v839 = vunpack.c.h.b16 %v265
    %v840 = vunpack.c.l.b16 %v266
    %v841 = vunpack.c.h.b16 %v266
    %v842 = vunpack.c.l.b16 %v267
    %v843 = vunpack.c.h.b16 %v267
    %v844 = vunpack.c.l.b16 %v268
    %v845 = vunpack.c.h.b16 %v268
    %v846 = vunpack.c.l.b16 %v269
    %v847 = vunpack.c.h.b16 %v269
    %v848 = vunpack.c.l.b16 %v270
    %v849 = vunpack.c.h.b16 %v270
    %v850 = vunpack.c.l.b16 %v271
    %v851 = vunpack.c.h.b16 %v271
    %v852 = vunpack.c.l.b16 %v272
    %v853 = vunpack.c.h.b16 %v272
    %v854 = vunpack.c.l.b16 %v273
    %v855 = vunpack.c.h.b16 %v273
    %v856 = vunpack.c.l.b16 %v274
    %v857 = vunpack.c.h.b16 %v274
    %v858 = vunpack.c.l.b16 %v275
    %v859 = vunpack.c.h.b16 %v275
    %v860 = vunpack.c.l.b16 %v276
    %v861 = vunpack.c.h.b16 %v276
    %v862 = vunpack.c.l.b16 %v277
    %v863 = vunpack.c.h.b16 %v277
    %v864 = vunpack.c.l.b16 %v278
    %v865 = vunpack.c.h.b16 %v278
    %v866 = vunpack.c.l.b16 %v279
    %v867 = vunpack.c.h.b16 %v279
    %v868 = vunpack.c.l.b16 %v280
    %v869 = vunpack.c.h.b16 %v280
    %v870 = vunpack.c.l.b16 %v281
    %v871 = vunpack.c.h.b16 %v281
    %v872 = vunpack.c.l.b16 %v282
    %v873 = vunpack.c.h.b16 %v282
    %v874 = vunpack.c.l.b16 %v283
    %v875 = vunpack.c.h.b16 %v283
    %v876 = vunpack.c.l.b16 %v284
    %v877 = vunpack.c.h.b16 %v284
    %v878 = vunpack.c.l.b16 %v285
    %v879 = vunpack.c.h.b16 %v285
    %v880 = vunpack.c.l.b16 %v286
    %v881 = vunpack.c.h.b16 %v286
    %v882 = vunpack.c.l.b16 %v287
    %v883 = vunpack.c.h.b16 %v287
    %v884 = vunpack.c.l.b16 %v288
    %v885 = vunpack.c.h.b16 %v288
    %v886 = vunpack.c.l.b16 %v289
    %v887 = vunpack.c.h.b16 %v289
    %v888 = vunpack.c.l.b16 %v290
    %v889 = vunpack.c.h.b16 %v290
    %v890 = vunpack.c.l.b16 %v291
    %v891 = vunpack.c.h.b16 %v291
    %v892 = vunpack.c.l.b16 %v292
    %v893 = vunpack.c.h.b16 %v292
    %v894 = vunpack.c.l.b16 %v293
    %v895 = vunpack.c.h.b16 %v293
    %v896 = vunpack.c.l.b16 %v294
    %v897 = vunpack.c.h.b16 %v294
    %v898 = vunpack.c.l.b16 %v295
    %v899 = vunpack.c.h.b16 %v295
    %v900 = vunpack.c.l.b16 %v296
    %v901 = vunpack.c.h.b16 %v296
    %v902 = vunpack.c.l.b16 %v297
    %v903 = vunpack.c.h.b16 %v297
    %v904 = vunpack.c.l.b16 %v298
    %v905 = vunpack.c.h.b16 %v298
    %v906 = vunpack.c.l.b16 %v299
    %v907 = vunpack.c.h.b16 %v299
    %v908 = vunpack.c.l.b16 %v300
    %v909 = vunpack.c.h.b16 %v300
    %v910 = vunpack.c.l.b16 %v301
    %v911 = vunpack.c.h.b16 %v301
    %v912 = vunpack.c.l.b16 %v302
    %v913 = vunpack.c.h.b16 %v302
    %v914 = vunpack.c.l.b16 %v303
    %v915 = vunpack.c.h.b16 %v303
    %v916 = vunpack.c.l.b16 %v304
    %v917 = vunpack.c.h.b16 %v304
    %v918 = vunpack.c.l.b16 %v305
    %v919 = vunpack.c.h.b16 %v305
    %v920 = vunpack.c.l.b16 %v306
    %v921 = vunpack.c.h.b16 %v306
    %v922 = vunpack.c.l.b16 %v307
    %v923 = vunpack.c.h.b16 %v307
    %v924 = vunpack.c.l.b16 %v308
    %v925 = vunpack.c.h.b16 %v308
    %v926 = vunpack.c.l.b16 %v309
    %v927 = vunpack.c.h.b16 %v309
    %v928 = vunpack.c.l.b16 %v310
    %v929 = vunpack.c.h.b16 %v310
    %v930 = vunpack.c.l.b16 %v311
    %v931 = vunpack.c.h.b16 %v311
    %v932 = vunpack.c.l.b16 %v312
    %v933 = vunpack.c.h.b16 %v312
    %v934 = vunpack.c.l.b16 %v313
    %v935 = vunpack.c.h.b16 %v313
    %v936 = vunpack.c.l.b16 %v314
    %v937 = vunpack.c.h.b16 %v314
    %v938 = vunpack.c.l.b16 %v315
    %v939 = vunpack.c.h.b16 %v315
    %v940 = vunpack.c.l.b16 %v316
    %v941 = vunpack.c.h.b16 %v316
    %v942 = vunpack.c.l.b16 %v317
    %v943 = vunpack.c.h.b16 %v317
    %v944 = vunpack.c.l.b16 %v318
    %v945 = vunpack.c.h.b16 %v318
    %v946 = vpack.c.b16 %v558, %v554
    %v947 = vpack.c.b16 %v559, %v555
    %v948 = vpack.c.b16 %v560, %v556
    %v949 = vpack.c.b16 %v561, %v557
    %v950 = vpack.c.b16 %v566, %v562
    %v951 = vpack.c.b16 %v567, %v563
    %v952 = vpack.c.b16 %v568, %v564
    %v953 = vpack.c.b16 %v569, %v565
    %v954 = vpack.c.b16 %v574, %v570
    %v955 = vpack.c.b16 %v575, %v571
    %v956 = vpack.c.b16 %v576, %v572
    %v957 = vpack.c.b16 %v577, %v573
    %v958 = vpack.c.b16 %v582, %v578
    %v959 = vpack.c.b16 %v583, %v579
    %v960 = vpack.c.b16 %v584, %v580
    %v961 = vpack.c.b16 %v585, %v581
    %v962 = vpack.c.b16 %v590, %v586
    %v963 = vpack.c.b16 %v591, %v587
    %v964 = vpack.c.b16 %v592, %v588
    %v965 = vpack.c.b16 %v593, %v589
    %v966 = vpack.c.b16 %v598, %v594
    %v967 = vpack.c.b16 %v599, %v595
    %v968 = vpack.c.b16 %v600, %v596
    %v969 = vpack.c.b16 %v601, %v597
    %v970 = vpack.c.b16 %v606, %v602
    %v971 = vpack.c.b16 %v607, %v603
    %v972 = vpack.c.b16 %v608, %v604
    %v973 = vpack.c.b16 %v609, %v605
    %v974 = vpack.c.b16 %v614, %v610
    %v975 = vpack.c.b16 %v615, %v611
    %v976 = vpack.c.b16 %v616, %v612
    %v977 = vpack.c.b16 %v617, %v613
    %v978 = vpack.c.b16 %v622, %v618
    %v979 = vpack.c.b16 %v623, %v619
    %v980 = vpack.c.b16 %v624, %v620
    %v981 = vpack.c.b16 %v625, %v621
    %v982 = vpack.c.b16 %v630, %v626
    %v983 = vpack.c.b16 %v631, %v627
    %v984 = vpack.c.b16 %v632, %v628
    %v985 = vpack.c.b16 %v633, %v629
    %v986 = vpack.c.b16 %v638, %v634
    %v987 = vpack.c.b16 %v639, %v635
    %v988 = vpack.c.b16 %v640, %v636
    %v989 = vpack.c.b16 %v641, %v637
    %v990 = vpack.c.b16 %v646, %v642
    %v991 = vpack.c.b16 %v647, %v643
    %v992 = vpack.c.b16 %v648, %v644
    %v993 = vpack.c.b16 %v649, %v645
    %v994 = vpack.c.b16 %v654, %v650
    %v995 = vpack.c.b16 %v655, %v651
    %v996 = vpack.c.b16 %v656, %v652
    %v997 = vpack.c.b16 %v657, %v653
    %v998 = vpack.c.b16 %v662, %v658
    %v999 = vpack.c.b16 %v663, %v659
    %v1000 = vpack.c.b16 %v664, %v660
    %v1001 = vpack.c.b16 %v665, %v661
    %v1002 = vpack.c.b16 %v670, %v666
    %v1003 = vpack.c.b16 %v671, %v667
    %v1004 = vpack.c.b16 %v672, %v668
    %v1005 = vpack.c.b16 %v673, %v669
    %v1006 = vpack.c.b16 %v678, %v674
    %v1007 = vpack.c.b16 %v679, %v675
    %v1008 = vpack.c.b16 %v680, %v676
    %v1009 = vpack.c.b16 %v681, %v677
    %v1010 = vpack.c.b16 %v686, %v682
    %v1011 = vpack.c.b16 %v687, %v683
    %v1012 = vpack.c.b16 %v688, %v684
    %v1013 = vpack.c.b16 %v689, %v685
    %v1014 = vpack.c.b16 %v694, %v690
    %v1015 = vpack.c.b16 %v695, %v691
    %v1016 = vpack.c.b16 %v696, %v692
    %v1017 = vpack.c.b16 %v697, %v693
    %v1018 = vpack.c.b16 %v702, %v698
    %v1019 = vpack.c.b16 %v703, %v699
    %v1020 = vpack.c.b16 %v704, %v700
    %v1021 = vpack.c.b16 %v705, %v701
    %v1022 = vpack.c.b16 %v710, %v706
    %v1023 = vpack.c.b16 %v711, %v707
    %v1024 = vpack.c.b16 %v712, %v708
    %v1025 = vpack.c.b16 %v713, %v709
    %v1026 = vpack.c.b16 %v718, %v714
    %v1027 = vpack.c.b16 %v719, %v715
    %v1028 = vpack.c.b16 %v720, %v716
    %v1029 = vpack.c.b16 %v721, %v717
    %v1030 = vpack.c.b16 %v726, %v722
    %v1031 = vpack.c.b16 %v727, %v723
    %v1032 = vpack.c.b16 %v728, %v724
    %v1033 = vpack.c.b16 %v729, %v725
    %v1034 = vpack.c.b16 %v734, %v730
    %v1035 = vpack.c.b16 %v735, %v731
    %v1036 = vpack.c.b16 %v736, %v732
    %v1037 = vpack.c.b16 %v737, %v733
    %v1038 = vpack.c.b16 %v742, %v738
    %v1039 = vpack.c.b16 %v743, %v739
    %v1040 = vpack.c.b16 %v744, %v740
    %v1041 = vpack.c.b16 %v745, %v741
    %v1042 = vpack.c.b16 %v750, %v746
    %v1043 = vpack.c.b16 %v751, %v747
    %v1044 = vpack.c.b16 %v752, %v748
    %v1045 = vpack.c.b16 %v753, %v749
    %v1046 = vpack.c.b16 %v758, %v754
    %v1047 = vpack.c.b16 %v759, %v755
    %v1048 = vpack.c.b16 %v760, %v756
    %v1049 = vpack.c.b16 %v761, %v757
    %v1050 = vpack.c.b16 %v766, %v762
    %v1051 = vpack.c.b16 %v767, %v763
    %v1052 = vpack.c.b16 %v768, %v764
    %v1053 = vpack.c.b16 %v769, %v765
    %v1054 = vpack.c.b16 %v774, %v770
    %v1055 = vpack.c.b16 %v775, %v771
    %v1056 = vpack.c.b16 %v776, %v772
    %v1057 = vpack.c.b16 %v777, %v773
    %v1058 = vpack.c.b16 %v782, %v778
    %v1059 = vpack.c.b16 %v783, %v779
    %v1060 = vpack.c.b16 %v784, %v780
    %v1061 = vpack.c.b16 %v785, %v781
    %v1062 = vpack.c.b16 %v790, %v786
    %v1063 = vpack.c.b16 %v791, %v787
    %v1064 = vpack.c.b16 %v792, %v788
    %v1065 = vpack.c.b16 %v793, %v789
    %v1066 = vpack.c.b16 %v798, %v794
    %v1067 = vpack.c.b16 %v799, %v795
    %v1068 = vpack.c.b16 %v800, %v796
    %v1069 = vpack.c.b16 %v801, %v797
    %v1070 = vpack.c.b16 %v806, %v802
    %v1071 = vpack.c.b16 %v807, %v803
    %v1072 = vpack.c.b16 %v808, %v804
    %v1073 = vpack.c.b16 %v809, %v805
    %v1074 = vpack.c.b16 %v814, %v810
    %v1075 = vpack.c.b16 %v815, %v811
    %v1076 = vpack.c.b16 %v816, %v812
    %v1077 = vpack.c.b16 %v817, %v813
    %v1078 = vpack.c.b16 %v822, %v818
    %v1079 = vpack.c.b16 %v823, %v819
    %v1080 = vpack.c.b16 %v824, %v820
    %v1081 = vpack.c.b16 %v825, %v821
    %v1082 = vpack.c.b16 %v830, %v826
    %v1083 = vpack.c.b16 %v831, %v827
    %v1084 = vpack.c.b16 %v832, %v828
    %v1085 = vpack.c.b16 %v833, %v829
    %v1086 = vpack.c.b16 %v838, %v834
    %v1087 = vpack.c.b16 %v839, %v835
    %v1088 = vpack.c.b16 %v840, %v836
    %v1089 = vpack.c.b16 %v841, %v837
    %v1090 = vpack.c.b16 %v846, %v842
    %v1091 = vpack.c.b16 %v847, %v843
    %v1092 = vpack.c.b16 %v848, %v844
    %v1093 = vpack.c.b16 %v849, %v845
    %v1094 = vpack.c.b16 %v854, %v850
    %v1095 = vpack.c.b16 %v855, %v851
    %v1096 = vpack.c.b16 %v856, %v852
    %v1097 = vpack.c.b16 %v857, %v853
    %v1098 = vpack.c.b16 %v862, %v858
    %v1099 = vpack.c.b16 %v863, %v859
    %v1100 = vpack.c.b16 %v864, %v860
    %v1101 = vpack.c.b16 %v865, %v861
    %v1102 = vpack.c.b16 %v870, %v866
    %v1103 = vpack.c.b16 %v871, %v867
    %v1104 = vpack.c.b16 %v872, %v868
    %v1105 = vpack.c.b16 %v873, %v869
    %v1106 = vpack.c.b16 %v878, %v874
    %v1107 = vpack.c.b16 %v879, %v875
    %v1108 = vpack.c.b16 %v880, %v876
    %v1109 = vpack.c.b16 %v881, %v877
    %v1110 = vpack.c.b16 %v886, %v882
    %v1111 = vpack.c.b16 %v887, %v883
    %v1112 = vpack.c.b16 %v888, %v884
    %v1113 = vpack.c.b16 %v889, %v885
    %v1114 = vpack.c.b16 %v894, %v890
    %v1115 = vpack.c.b16 %v895, %v891
    %v1116 = vpack.c.b16 %v896, %v892
    %v1117 = vpack.c.b16 %v897, %v893
    %v1118 = vpack.c.b16 %v902, %v898
    %v1119 = vpack.c.b16 %v903, %v899
    %v1120 = vpack.c.b16 %v904, %v900
    %v1121 = vpack.c.b16 %v905, %v901
    %v1122 = vpack.c.b16 %v910, %v906
    %v1123 = vpack.c.b16 %v911, %v907
    %v1124 = vpack.c.b16 %v912, %v908
    %v1125 = vpack.c.b16 %v913, %v909
    %v1126 = vpack.c.b16 %v918, %v914
    %v1127 = vpack.c.b16 %v919, %v915
    %v1128 = vpack.c.b16 %v920, %v916
    %v1129 = vpack.c.b16 %v921, %v917
    %v1130 = vpack.c.b16 %v926, %v922
    %v1131 = vpack.c.b16 %v927, %v923
    %v1132 = vpack.c.b16 %v928, %v924
    %v1133 = vpack.c.b16 %v929, %v925
    %v1134 = vpack.c.b16 %v934, %v930
    %v1135 = vpack.c.b16 %v935, %v931
    %v1136 = vpack.c.b16 %v936, %v932
    %v1137 = vpack.c.b16 %v937, %v933
    %v1138 = vpack.c.b16 %v942, %v938
    %v1139 = vpack.c.b16 %v943, %v939
    %v1140 = vpack.c.b16 %v944, %v940
    %v1141 = vpack.c.b16 %v945, %v941
    %vm1338 = vcmask 130048
    %v1340 = vsel %vm1338, %v122, 0
    %1342 = vmatprep.subr.bf16.mxu0 %v947
    %1343 = vmatpush1.bf16.msra.mxu0 %v946
    %1344 = vmatprep.subr.bf16.mxu0 %v951
    %1345 = vmatpush1.bf16.msra.mxu0 %v950
    %1346 = vmatprep.subr.bf16.mxu0 %v955
    %1347 = vmatpush1.bf16.msra.mxu0 %v954
    %1348 = vmatprep.subr.bf16.mxu0 %v959
    %1349 = vmatpush1.bf16.msra.mxu0 %v958
    %1350 = vmatprep.subr.bf16.mxu0 %v963
    %1351 = vmatpush1.bf16.msra.mxu0 %v962
    %1352 = vmatprep.subr.bf16.mxu0 %v967
    %1353 = vmatpush1.bf16.msra.mxu0 %v966
    %1354 = vmatprep.subr.bf16.mxu0 %v971
    %1355 = vmatpush1.bf16.msra.mxu0 %v970
    %1356 = vmatprep.subr.bf16.mxu0 %v975
    %1357 = vmatpush1.bf16.msra.mxu0 %v974
    %1358 = vmatprep.subr.bf16.mxu0 %v979
    %1359 = vmatpush1.bf16.msra.mxu0 %v978
    %1360 = vmatprep.subr.bf16.mxu0 %v983
    %1361 = vmatpush1.bf16.msra.mxu0 %v982
    %1362 = vmatprep.subr.bf16.mxu0 %v987
    %1363 = vmatpush1.bf16.msra.mxu0 %v986
    %1364 = vmatprep.subr.bf16.mxu0 %v991
    %1365 = vmatpush1.bf16.msra.mxu0 %v990
    %1366 = vmatprep.subr.bf16.mxu0 %v995
    %1367 = vmatpush1.bf16.msra.mxu0 %v994
    %1368 = vmatprep.subr.bf16.mxu0 %v999
    %1369 = vmatpush1.bf16.msra.mxu0 %v998
    %1370 = vmatprep.subr.bf16.mxu0 %v1003
    %1371 = vmatpush1.bf16.msra.mxu0 %v1002
    %1372 = vmatprep.subr.bf16.mxu0 %v1007
    %1373 = vmatpush1.bf16.msra.mxu0 %v1006
    %1374 = vmatprep.mubr.bf16.mxu0 %v117
    %1375 = vmatmul.mubr.bf16.gmra.mrb[0].mxu0 %v116
    %v1376 = vpop.f32.mrb[0].mxu0
    %v1377 = vadd.f32 %v345, %v1376
    %v1378 = vpop.f32.mrb[0].mxu0
    %v1379 = vadd.f32 %v349, %v1378
    %v1380 = vpop.f32.mrb[0].mxu0
    %v1381 = vadd.f32 %v345, %v1380
    %v1382 = vpop.f32.mrb[0].mxu0
    %v1383 = vadd.f32 %v349, %v1382
    %1384 = vdwg.mxu0
    %1385 = vmatprep.subr.bf16.mxu0 %v1011
    %1386 = vmatpush1.bf16.msra.mxu0 %v1010
    %1387 = vmatprep.subr.bf16.mxu0 %v1015
    %1388 = vmatpush1.bf16.msra.mxu0 %v1014
    %1389 = vmatprep.subr.bf16.mxu0 %v1019
    %1390 = vmatpush1.bf16.msra.mxu0 %v1018
    %1391 = vmatprep.subr.bf16.mxu0 %v1023
    %1392 = vmatpush1.bf16.msra.mxu0 %v1022
    %1393 = vmatprep.subr.bf16.mxu0 %v1027
    %1394 = vmatpush1.bf16.msra.mxu0 %v1026
    %1395 = vmatprep.subr.bf16.mxu0 %v1031
    %1396 = vmatpush1.bf16.msra.mxu0 %v1030
    %1397 = vmatprep.subr.bf16.mxu0 %v1035
    %1398 = vmatpush1.bf16.msra.mxu0 %v1034
    %1399 = vmatprep.subr.bf16.mxu0 %v1039
    %1400 = vmatpush1.bf16.msra.mxu0 %v1038
    %1401 = vmatprep.subr.bf16.mxu0 %v1043
    %1402 = vmatpush1.bf16.msra.mxu0 %v1042
    %1403 = vmatprep.subr.bf16.mxu0 %v1047
    %1404 = vmatpush1.bf16.msra.mxu0 %v1046
    %1405 = vmatprep.subr.bf16.mxu0 %v1051
    %1406 = vmatpush1.bf16.msra.mxu0 %v1050
    %1407 = vmatprep.subr.bf16.mxu0 %v1055
    %1408 = vmatpush1.bf16.msra.mxu0 %v1054
    %1409 = vmatprep.subr.bf16.mxu0 %v1059
    %1410 = vmatpush1.bf16.msra.mxu0 %v1058
    %1411 = vmatprep.subr.bf16.mxu0 %v1063
    %1412 = vmatpush1.bf16.msra.mxu0 %v1062
    %1413 = vmatprep.subr.bf16.mxu0 %v1067
    %1414 = vmatpush1.bf16.msra.mxu0 %v1066
    %1415 = vmatprep.subr.bf16.mxu0 %v1071
    %1416 = vmatpush1.bf16.msra.mxu0 %v1070
    %1417 = vmatprep.mubr.bf16.mxu0 %v119
    %1418 = vmatmul.mubr.bf16.gmra.mrb[0].mxu0 %v118
    %v1419 = vpop.f32.mrb[0].mxu0
    %v1420 = vadd.f32 %v1377, %v1419
    %v1421 = vpop.f32.mrb[0].mxu0
    %v1422 = vadd.f32 %v1379, %v1421
    %v1423 = vpop.f32.mrb[0].mxu0
    %v1424 = vadd.f32 %v1381, %v1423
    %v1425 = vpop.f32.mrb[0].mxu0
    %v1426 = vadd.f32 %v1383, %v1425
    %1427 = vdwg.mxu0
    %1428 = vmatprep.subr.bf16.mxu0 %v1075
    %1429 = vmatpush1.bf16.msra.mxu0 %v1074
    %1430 = vmatprep.subr.bf16.mxu0 %v1079
    %1431 = vmatpush1.bf16.msra.mxu0 %v1078
    %1432 = vmatprep.subr.bf16.mxu0 %v1083
    %1433 = vmatpush1.bf16.msra.mxu0 %v1082
    %1434 = vmatprep.subr.bf16.mxu0 %v1087
    %1435 = vmatpush1.bf16.msra.mxu0 %v1086
    %1436 = vmatprep.subr.bf16.mxu0 %v1091
    %1437 = vmatpush1.bf16.msra.mxu0 %v1090
    %1438 = vmatprep.subr.bf16.mxu0 %v1095
    %1439 = vmatpush1.bf16.msra.mxu0 %v1094
    %1440 = vmatprep.subr.bf16.mxu0 %v1099
    %1441 = vmatpush1.bf16.msra.mxu0 %v1098
    %1442 = vmatprep.subr.bf16.mxu0 %v1103
    %1443 = vmatpush1.bf16.msra.mxu0 %v1102
    %1444 = vmatprep.subr.bf16.mxu0 %v1107
    %1445 = vmatpush1.bf16.msra.mxu0 %v1106
    %1446 = vmatprep.subr.bf16.mxu0 %v1111
    %1447 = vmatpush1.bf16.msra.mxu0 %v1110
    %1448 = vmatprep.subr.bf16.mxu0 %v1115
    %1449 = vmatpush1.bf16.msra.mxu0 %v1114
    %1450 = vmatprep.subr.bf16.mxu0 %v1119
    %1451 = vmatpush1.bf16.msra.mxu0 %v1118
    %1452 = vmatprep.subr.bf16.mxu0 %v1123
    %1453 = vmatpush1.bf16.msra.mxu0 %v1122
    %1454 = vmatprep.subr.bf16.mxu0 %v1127
    %1455 = vmatpush1.bf16.msra.mxu0 %v1126
    %1456 = vmatprep.subr.bf16.mxu0 %v1131
    %1457 = vmatpush1.bf16.msra.mxu0 %v1130
    %1458 = vmatprep.subr.bf16.mxu0 %v1135
    %1459 = vmatpush1.bf16.msra.mxu0 %v1134
    %1460 = vmatprep.mubr.bf16.mxu0 %v121
    %1461 = vmatmul.mubr.bf16.gmra.mrb[0].mxu0 %v120
    %v1462 = vpop.f32.mrb[0].mxu0
    %v1463 = vadd.f32 %v1420, %v1462
    %v1464 = vpop.f32.mrb[0].mxu0
    %v1465 = vadd.f32 %v1422, %v1464
    %v1466 = vpop.f32.mrb[0].mxu0
    %v1467 = vadd.f32 %v1424, %v1466
    %v1468 = vpop.f32.mrb[0].mxu0
    %v1469 = vadd.f32 %v1426, %v1468
    %1470 = vdwg.mxu0
    %1471 = vmatprep.subr.bf16.mxu0 %v1139
    %1472 = vmatpush1.bf16.msra.mxu0 %v1138
    %1473 = vmatprep.subr.bf16.mxu0 0
    %1474 = vmatpush1.bf16.msra.mxu0 0
    %1475 = vmatprep.subr.bf16.mxu0 0
    %1476 = vmatpush1.bf16.msra.mxu0 0
    %1477 = vmatprep.subr.bf16.mxu0 0
    %1478 = vmatpush1.bf16.msra.mxu0 0
    %1479 = vmatprep.subr.bf16.mxu0 0
    %1480 = vmatpush1.bf16.msra.mxu0 0
    %1481 = vmatprep.subr.bf16.mxu0 0
    %1482 = vmatpush1.bf16.msra.mxu0 0
    %1483 = vmatprep.subr.bf16.mxu0 0
    %1484 = vmatpush1.bf16.msra.mxu0 0
    %1485 = vmatprep.subr.bf16.mxu0 0
    %1486 = vmatpush1.bf16.msra.mxu0 0
    %1487 = vmatprep.subr.bf16.mxu0 0
    %1488 = vmatpush1.bf16.msra.mxu0 0
    %1489 = vmatprep.subr.bf16.mxu0 0
    %1490 = vmatpush1.bf16.msra.mxu0 0
    %1491 = vmatprep.subr.bf16.mxu0 0
    %1492 = vmatpush1.bf16.msra.mxu0 0
    %1493 = vmatprep.subr.bf16.mxu0 0
    %1494 = vmatpush1.bf16.msra.mxu0 0
    %1495 = vmatprep.subr.bf16.mxu0 0
    %1496 = vmatpush1.bf16.msra.mxu0 0
    %1497 = vmatprep.subr.bf16.mxu0 0
    %1498 = vmatpush1.bf16.msra.mxu0 0
    %1499 = vmatprep.subr.bf16.mxu0 0
    %1500 = vmatpush1.bf16.msra.mxu0 0
    %1501 = vmatprep.subr.bf16.mxu0 0
    %1502 = vmatpush1.bf16.msra.mxu0 0
    %1503 = vmatprep.mubr.bf16.mxu0 0
    %1504 = vmatmul.mubr.bf16.gmra.mrb[0].mxu0 %v1340
    %v1505 = vpop.f32.mrb[0].mxu0
    %v1506 = vadd.f32 %v1463, %v1505
    %v1507 = vpop.f32.mrb[0].mxu0
    %v1508 = vadd.f32 %v1465, %v1507
    %v1509 = vpop.f32.mrb[0].mxu0
    %v1510 = vadd.f32 %v1467, %v1509
    %v1511 = vpop.f32.mrb[0].mxu0
    %v1512 = vadd.f32 %v1469, %v1511
    %1513 = vdwg.mxu0
    %1514 = vmatprep.subr.bf16.mxu0 %v949
    %1515 = vmatpush1.bf16.msra.mxu0 %v948
    %1516 = vmatprep.subr.bf16.mxu0 %v953
    %1517 = vmatpush1.bf16.msra.mxu0 %v952
    %1518 = vmatprep.subr.bf16.mxu0 %v957
    %1519 = vmatpush1.bf16.msra.mxu0 %v956
    %1520 = vmatprep.subr.bf16.mxu0 %v961
    %1521 = vmatpush1.bf16.msra.mxu0 %v960
    %1522 = vmatprep.subr.bf16.mxu0 %v965
    %1523 = vmatpush1.bf16.msra.mxu0 %v964
    %1524 = vmatprep.subr.bf16.mxu0 %v969
    %1525 = vmatpush1.bf16.msra.mxu0 %v968
    %1526 = vmatprep.subr.bf16.mxu0 %v973
    %1527 = vmatpush1.bf16.msra.mxu0 %v972
    %1528 = vmatprep.subr.bf16.mxu0 %v977
    %1529 = vmatpush1.bf16.msra.mxu0 %v976
    %1530 = vmatprep.subr.bf16.mxu0 %v981
    %1531 = vmatpush1.bf16.msra.mxu0 %v980
    %1532 = vmatprep.subr.bf16.mxu0 %v985
    %1533 = vmatpush1.bf16.msra.mxu0 %v984
    %1534 = vmatprep.subr.bf16.mxu0 %v989
    %1535 = vmatpush1.bf16.msra.mxu0 %v988
    %1536 = vmatprep.subr.bf16.mxu0 %v993
    %1537 = vmatpush1.bf16.msra.mxu0 %v992
    %1538 = vmatprep.subr.bf16.mxu0 %v997
    %1539 = vmatpush1.bf16.msra.mxu0 %v996
    %1540 = vmatprep.subr.bf16.mxu0 %v1001
    %1541 = vmatpush1.bf16.msra.mxu0 %v1000
    %1542 = vmatprep.subr.bf16.mxu0 %v1005
    %1543 = vmatpush1.bf16.msra.mxu0 %v1004
    %1544 = vmatprep.subr.bf16.mxu0 %v1009
    %1545 = vmatpush1.bf16.msra.mxu0 %v1008
    %1546 = vmatprep.mubr.bf16.mxu0 %v117
    %1547 = vmatmul.mubr.bf16.gmra.mrb[0].mxu0 %v116
    %v1548 = vpop.f32.mrb[0].mxu0
    %v1549 = vadd.f32 %v353, %v1548
    %v1550 = vpop.f32.mrb[0].mxu0
    %v1551 = vadd.f32 %v357, %v1550
    %v1552 = vpop.f32.mrb[0].mxu0
    %v1553 = vadd.f32 %v353, %v1552
    %v1554 = vpop.f32.mrb[0].mxu0
    %v1555 = vadd.f32 %v357, %v1554
    %1556 = vdwg.mxu0
    %1557 = vmatprep.subr.bf16.mxu0 %v1013
    %1558 = vmatpush1.bf16.msra.mxu0 %v1012
    %1559 = vmatprep.subr.bf16.mxu0 %v1017
    %1560 = vmatpush1.bf16.msra.mxu0 %v1016
    %1561 = vmatprep.subr.bf16.mxu0 %v1021
    %1562 = vmatpush1.bf16.msra.mxu0 %v1020
    %1563 = vmatprep.subr.bf16.mxu0 %v1025
    %1564 = vmatpush1.bf16.msra.mxu0 %v1024
    %1565 = vmatprep.subr.bf16.mxu0 %v1029
    %1566 = vmatpush1.bf16.msra.mxu0 %v1028
    %1567 = vmatprep.subr.bf16.mxu0 %v1033
    %1568 = vmatpush1.bf16.msra.mxu0 %v1032
    %1569 = vmatprep.subr.bf16.mxu0 %v1037
    %1570 = vmatpush1.bf16.msra.mxu0 %v1036
    %1571 = vmatprep.subr.bf16.mxu0 %v1041
    %1572 = vmatpush1.bf16.msra.mxu0 %v1040
    %1573 = vmatprep.subr.bf16.mxu0 %v1045
    %1574 = vmatpush1.bf16.msra.mxu0 %v1044
    %1575 = vmatprep.subr.bf16.mxu0 %v1049
    %1576 = vmatpush1.bf16.msra.mxu0 %v1048
    %1577 = vmatprep.subr.bf16.mxu0 %v1053
    %1578 = vmatpush1.bf16.msra.mxu0 %v1052
    %1579 = vmatprep.subr.bf16.mxu0 %v1057
    %1580 = vmatpush1.bf16.msra.mxu0 %v1056
    %1581 = vmatprep.subr.bf16.mxu0 %v1061
    %1582 = vmatpush1.bf16.msra.mxu0 %v1060
    %1583 = vmatprep.subr.bf16.mxu0 %v1065
    %1584 = vmatpush1.bf16.msra.mxu0 %v1064
    %1585 = vmatprep.subr.bf16.mxu0 %v1069
    %1586 = vmatpush1.bf16.msra.mxu0 %v1068
    %1587 = vmatprep.subr.bf16.mxu0 %v1073
    %1588 = vmatpush1.bf16.msra.mxu0 %v1072
    %1589 = vmatprep.mubr.bf16.mxu0 %v119
    %1590 = vmatmul.mubr.bf16.gmra.mrb[0].mxu0 %v118
    %v1591 = vpop.f32.mrb[0].mxu0
    %v1592 = vadd.f32 %v1549, %v1591
    %v1593 = vpop.f32.mrb[0].mxu0
    %v1594 = vadd.f32 %v1551, %v1593
    %v1595 = vpop.f32.mrb[0].mxu0
    %v1596 = vadd.f32 %v1553, %v1595
    %v1597 = vpop.f32.mrb[0].mxu0
    %v1598 = vadd.f32 %v1555, %v1597
    %1599 = vdwg.mxu0
    %1600 = vmatprep.subr.bf16.mxu0 %v1077
    %1601 = vmatpush1.bf16.msra.mxu0 %v1076
    %1602 = vmatprep.subr.bf16.mxu0 %v1081
    %1603 = vmatpush1.bf16.msra.mxu0 %v1080
    %1604 = vmatprep.subr.bf16.mxu0 %v1085
    %1605 = vmatpush1.bf16.msra.mxu0 %v1084
    %1606 = vmatprep.subr.bf16.mxu0 %v1089
    %1607 = vmatpush1.bf16.msra.mxu0 %v1088
    %1608 = vmatprep.subr.bf16.mxu0 %v1093
    %1609 = vmatpush1.bf16.msra.mxu0 %v1092
    %1610 = vmatprep.subr.bf16.mxu0 %v1097
    %1611 = vmatpush1.bf16.msra.mxu0 %v1096
    %1612 = vmatprep.subr.bf16.mxu0 %v1101
    %1613 = vmatpush1.bf16.msra.mxu0 %v1100
    %1614 = vmatprep.subr.bf16.mxu0 %v1105
    %1615 = vmatpush1.bf16.msra.mxu0 %v1104
    %1616 = vmatprep.subr.bf16.mxu0 %v1109
    %1617 = vmatpush1.bf16.msra.mxu0 %v1108
    %1618 = vmatprep.subr.bf16.mxu0 %v1113
    %1619 = vmatpush1.bf16.msra.mxu0 %v1112
    %1620 = vmatprep.subr.bf16.mxu0 %v1117
    %1621 = vmatpush1.bf16.msra.mxu0 %v1116
    %1622 = vmatprep.subr.bf16.mxu0 %v1121
    %1623 = vmatpush1.bf16.msra.mxu0 %v1120
    %1624 = vmatprep.subr.bf16.mxu0 %v1125
    %1625 = vmatpush1.bf16.msra.mxu0 %v1124
    %1626 = vmatprep.subr.bf16.mxu0 %v1129
    %1627 = vmatpush1.bf16.msra.mxu0 %v1128
    %1628 = vmatprep.subr.bf16.mxu0 %v1133
    %1629 = vmatpush1.bf16.msra.mxu0 %v1132
    %1630 = vmatprep.subr.bf16.mxu0 %v1137
    %1631 = vmatpush1.bf16.msra.mxu0 %v1136
    %1632 = vmatprep.mubr.bf16.mxu0 %v121
    %1633 = vmatmul.mubr.bf16.gmra.mrb[0].mxu0 %v120
    %v1634 = vpop.f32.mrb[0].mxu0
    %v1635 = vadd.f32 %v1592, %v1634
    %v1636 = vpop.f32.mrb[0].mxu0
    %v1637 = vadd.f32 %v1594, %v1636
    %v1638 = vpop.f32.mrb[0].mxu0
    %v1639 = vadd.f32 %v1596, %v1638
    %v1640 = vpop.f32.mrb[0].mxu0
    %v1641 = vadd.f32 %v1598, %v1640
    %1642 = vdwg.mxu0
    %1643 = vmatprep.subr.bf16.mxu0 %v1141
    %1644 = vmatpush1.bf16.msra.mxu0 %v1140
    %1645 = vmatprep.subr.bf16.mxu0 0
    %1646 = vmatpush1.bf16.msra.mxu0 0
    %1647 = vmatprep.subr.bf16.mxu0 0
    %1648 = vmatpush1.bf16.msra.mxu0 0
    %1649 = vmatprep.subr.bf16.mxu0 0
    %1650 = vmatpush1.bf16.msra.mxu0 0
    %1651 = vmatprep.subr.bf16.mxu0 0
    %1652 = vmatpush1.bf16.msra.mxu0 0
    %1653 = vmatprep.subr.bf16.mxu0 0
    %1654 = vmatpush1.bf16.msra.mxu0 0
    %1655 = vmatprep.subr.bf16.mxu0 0
    %1656 = vmatpush1.bf16.msra.mxu0 0
    %1657 = vmatprep.subr.bf16.mxu0 0
    %1658 = vmatpush1.bf16.msra.mxu0 0
    %1659 = vmatprep.subr.bf16.mxu0 0
    %1660 = vmatpush1.bf16.msra.mxu0 0
    %1661 = vmatprep.subr.bf16.mxu0 0
    %1662 = vmatpush1.bf16.msra.mxu0 0
    %1663 = vmatprep.subr.bf16.mxu0 0
    %1664 = vmatpush1.bf16.msra.mxu0 0
    %1665 = vmatprep.subr.bf16.mxu0 0
    %1666 = vmatpush1.bf16.msra.mxu0 0
    %1667 = vmatprep.subr.bf16.mxu0 0
    %1668 = vmatpush1.bf16.msra.mxu0 0
    %1669 = vmatprep.subr.bf16.mxu0 0
    %1670 = vmatpush1.bf16.msra.mxu0 0
    %1671 = vmatprep.subr.bf16.mxu0 0
    %1672 = vmatpush1.bf16.msra.mxu0 0
    %1673 = vmatprep.subr.bf16.mxu0 0
    %1674 = vmatpush1.bf16.msra.mxu0 0
    %1675 = vmatprep.mubr.bf16.mxu0 0
    %1676 = vmatmul.mubr.bf16.gmra.mrb[0].mxu0 %v1340
    %v1677 = vpop.f32.mrb[0].mxu0
    %v1678 = vadd.f32 %v1635, %v1677
    %v1679 = vpop.f32.mrb[0].mxu0
    %v1680 = vadd.f32 %v1637, %v1679
    %v1681 = vpop.f32.mrb[0].mxu0
    %v1682 = vadd.f32 %v1639, %v1681
    %v1683 = vpop.f32.mrb[0].mxu0
    %v1684 = vadd.f32 %v1641, %v1683
    %1685 = vdwg.mxu0
    %v1686 = vmax.f32 %v1506, 0.0
    %v1687 = vmax.f32 %v1508, 0.0
    %v1688 = vmax.f32 %v1678, 0.0
    %v1689 = vmax.f32 %v1680, 0.0
    %v1690 = vmax.f32 %v1510, 0.0
    %v1691 = vmax.f32 %v1512, 0.0
    %v1692 = vmax.f32 %v1682, 0.0
    %v1693 = vmax.f32 %v1684, 0.0
    %v1694 = vpack.c.bf16 %v1690, %v1686
    %v1695 = vpack.c.bf16 %v1691, %v1687
    %v1696 = vpack.c.bf16 %v1692, %v1688
    %v1697 = vpack.c.bf16 %v1693, %v1689
    %v1698 = vld [vmem:[#allocation7] sm:$0xff]
    %v1699 = vld [vmem:[#allocation7 + $0x8] sm:$0xff]
    %v1700 = vld [vmem:[#allocation7 + $0x10] sm:$0xff]
    %v1701 = vld [vmem:[#allocation7 + $0x18] sm:$0xff]
    %v1702 = vld [vmem:[#allocation7 + $0x20] sm:$0xff]
    %v1703 = vld [vmem:[#allocation7 + $0x28] sm:$0xff]
    %v1704 = vld [vmem:[#allocation7 + $0x30] sm:$0xff]
    %v1705 = vld [vmem:[#allocation7 + $0x38] sm:$0xff]
    %v1706 = vld [vmem:[#allocation7 + $0x40] sm:$0xff]
    %v1707 = vld [vmem:[#allocation7 + $0x48] sm:$0xff]
    %v1708 = vld [vmem:[#allocation7 + $0x50] sm:$0xff]
    %v1709 = vld [vmem:[#allocation7 + $0x58] sm:$0xff]
    %v1710 = vld [vmem:[#allocation7 + $0x60] sm:$0xff]
    %v1711 = vld [vmem:[#allocation7 + $0x68] sm:$0xff]
    %v1712 = vld [vmem:[#allocation7 + $0x70] sm:$0xff]
    %v1713 = vld [vmem:[#allocation7 + $0x78] sm:$0xff]
    %v1714 = vld [vmem:[#allocation7 + $0x80] sm:$0xff]
    %v1715 = vld [vmem:[#allocation7 + $0x88] sm:$0xff]
    %v1716 = vld [vmem:[#allocation7 + $0x90] sm:$0xff]
    %v1717 = vld [vmem:[#allocation7 + $0x98] sm:$0xff]
    %v1718 = vld [vmem:[#allocation7 + $0xa0] sm:$0xff]
    %v1719 = vld [vmem:[#allocation7 + $0xa8] sm:$0xff]
    %v1720 = vld [vmem:[#allocation7 + $0xb0] sm:$0xff]
    %v1721 = vld [vmem:[#allocation7 + $0xb8] sm:$0xff]
    %v1722 = vld [vmem:[#allocation7 + $0xc0] sm:$0xff]
    %v1723 = vld [vmem:[#allocation7 + $0xc8] sm:$0xff]
    %v1724 = vld [vmem:[#allocation7 + $0xd0] sm:$0xff]
    %v1725 = vld [vmem:[#allocation7 + $0xd8] sm:$0xff]
    %v1726 = vld [vmem:[#allocation7 + $0xe0] sm:$0xff]
    %v1727 = vld [vmem:[#allocation7 + $0xe8] sm:$0xff]
    %v1728 = vld [vmem:[#allocation7 + $0xf0] sm:$0xff]
    %v1729 = vld [vmem:[#allocation7 + $0xf8] sm:$0xff]
    %v1730 = vld [vmem:[#allocation7 + $0x100] sm:$0xff]
    %v1731 = vld [vmem:[#allocation7 + $0x108] sm:$0xff]
    %v1732 = vld [vmem:[#allocation7 + $0x110] sm:$0xff]
    %v1733 = vld [vmem:[#allocation7 + $0x118] sm:$0xff]
    %v1734 = vld [vmem:[#allocation7 + $0x120] sm:$0xff]
    %v1735 = vld [vmem:[#allocation7 + $0x128] sm:$0xff]
    %v1736 = vld [vmem:[#allocation7 + $0x130] sm:$0xff]
    %v1737 = vld [vmem:[#allocation7 + $0x138] sm:$0xff]
    %v1738 = vld [vmem:[#allocation7 + $0x140] sm:$0xff]
    %v1739 = vld [vmem:[#allocation7 + $0x148] sm:$0xff]
    %v1740 = vld [vmem:[#allocation7 + $0x150] sm:$0xff]
    %v1741 = vld [vmem:[#allocation7 + $0x158] sm:$0xff]
    %v1742 = vld [vmem:[#allocation7 + $0x160] sm:$0xff]
    %v1743 = vld [vmem:[#allocation7 + $0x168] sm:$0xff]
    %v1744 = vld [vmem:[#allocation7 + $0x170] sm:$0xff]
    %v1745 = vld [vmem:[#allocation7 + $0x178] sm:$0xff]
    %v1746 = vld [vmem:[#allocation7 + $0x180] sm:$0xff]
    %v1747 = vld [vmem:[#allocation7 + $0x188] sm:$0xff]
    %v1748 = vld [vmem:[#allocation7 + $0x190] sm:$0xff]
    %v1749 = vld [vmem:[#allocation7 + $0x198] sm:$0xff]
    %v1750 = vld [vmem:[#allocation7 + $0x1a0] sm:$0xff]
    %v1751 = vld [vmem:[#allocation7 + $0x1a8] sm:$0xff]
    %v1752 = vld [vmem:[#allocation7 + $0x1b0] sm:$0xff]
    %v1753 = vld [vmem:[#allocation7 + $0x1b8] sm:$0xff]
    %v1754 = vld [vmem:[#allocation7 + $0x1c0] sm:$0xff]
    %v1755 = vld [vmem:[#allocation7 + $0x1c8] sm:$0xff]
    %v1756 = vld [vmem:[#allocation7 + $0x1d0] sm:$0xff]
    %v1757 = vld [vmem:[#allocation7 + $0x1d8] sm:$0xff]
    %v1758 = vld [vmem:[#allocation7 + $0x1e0] sm:$0xff]
    %v1759 = vld [vmem:[#allocation7 + $0x1e8] sm:$0xff]
    %v1760 = vld [vmem:[#allocation7 + $0x1f0] sm:$0xff]
    %v1761 = vld [vmem:[#allocation7 + $0x1f8] sm:$0xff]
    %v1762 = vld [vmem:[%s4] sm:$0x3]
    %v1763 = vunpack.c.l.bf16 %v1762
    %v1765 = vlaneseq
    %v1766 = vshrl.u32 %v1765, 7
    %v1767 = vsub.s32 0, %v1766
    %v1768 = vrot.slane %v1763, %v1767
    %v1769 = vlaneseq
    %v1770 = vshrl.u32 %v1769, 7
    %v1771 = vsub.s32 2, %v1770
    %v1772 = vrot.slane %v1763, %v1771
    %v1775 = vlaneseq
    %v1776 = vshrl.u32 %v1775, 7
    %v1777 = vsub.s32 0, %v1776
    %v1778 = vrot.slane %v1768, %v1777
    %v1779 = vlaneseq
    %v1780 = vshrl.u32 %v1779, 7
    %v1781 = vsub.s32 0, %v1780
    %v1782 = vrot.slane %v1772, %v1781
    %v1847 = vunpack.c.l.b16 %v1698
    %v1848 = vunpack.c.h.b16 %v1698
    %v1849 = vunpack.c.l.b16 %v1699
    %v1850 = vunpack.c.h.b16 %v1699
    %v1851 = vunpack.c.l.b16 %v1700
    %v1852 = vunpack.c.h.b16 %v1700
    %v1853 = vunpack.c.l.b16 %v1701
    %v1854 = vunpack.c.h.b16 %v1701
    %v1855 = vunpack.c.l.b16 %v1702
    %v1856 = vunpack.c.h.b16 %v1702
    %v1857 = vunpack.c.l.b16 %v1703
    %v1858 = vunpack.c.h.b16 %v1703
    %v1859 = vunpack.c.l.b16 %v1704
    %v1860 = vunpack.c.h.b16 %v1704
    %v1861 = vunpack.c.l.b16 %v1705
    %v1862 = vunpack.c.h.b16 %v1705
    %v1863 = vunpack.c.l.b16 %v1706
    %v1864 = vunpack.c.h.b16 %v1706
    %v1865 = vunpack.c.l.b16 %v1707
    %v1866 = vunpack.c.h.b16 %v1707
    %v1867 = vunpack.c.l.b16 %v1708
    %v1868 = vunpack.c.h.b16 %v1708
    %v1869 = vunpack.c.l.b16 %v1709
    %v1870 = vunpack.c.h.b16 %v1709
    %v1871 = vunpack.c.l.b16 %v1710
    %v1872 = vunpack.c.h.b16 %v1710
    %v1873 = vunpack.c.l.b16 %v1711
    %v1874 = vunpack.c.h.b16 %v1711
    %v1875 = vunpack.c.l.b16 %v1712
    %v1876 = vunpack.c.h.b16 %v1712
    %v1877 = vunpack.c.l.b16 %v1713
    %v1878 = vunpack.c.h.b16 %v1713
    %v1879 = vunpack.c.l.b16 %v1714
    %v1880 = vunpack.c.h.b16 %v1714
    %v1881 = vunpack.c.l.b16 %v1715
    %v1882 = vunpack.c.h.b16 %v1715
    %v1883 = vunpack.c.l.b16 %v1716
    %v1884 = vunpack.c.h.b16 %v1716
    %v1885 = vunpack.c.l.b16 %v1717
    %v1886 = vunpack.c.h.b16 %v1717
    %v1887 = vunpack.c.l.b16 %v1718
    %v1888 = vunpack.c.h.b16 %v1718
    %v1889 = vunpack.c.l.b16 %v1719
    %v1890 = vunpack.c.h.b16 %v1719
    %v1891 = vunpack.c.l.b16 %v1720
    %v1892 = vunpack.c.h.b16 %v1720
    %v1893 = vunpack.c.l.b16 %v1721
    %v1894 = vunpack.c.h.b16 %v1721
    %v1895 = vunpack.c.l.b16 %v1722
    %v1896 = vunpack.c.h.b16 %v1722
    %v1897 = vunpack.c.l.b16 %v1723
    %v1898 = vunpack.c.h.b16 %v1723
    %v1899 = vunpack.c.l.b16 %v1724
    %v1900 = vunpack.c.h.b16 %v1724
    %v1901 = vunpack.c.l.b16 %v1725
    %v1902 = vunpack.c.h.b16 %v1725
    %v1903 = vunpack.c.l.b16 %v1726
    %v1904 = vunpack.c.h.b16 %v1726
    %v1905 = vunpack.c.l.b16 %v1727
    %v1906 = vunpack.c.h.b16 %v1727
    %v1907 = vunpack.c.l.b16 %v1728
    %v1908 = vunpack.c.h.b16 %v1728
    %v1909 = vunpack.c.l.b16 %v1729
    %v1910 = vunpack.c.h.b16 %v1729
    %v1911 = vunpack.c.l.b16 %v1730
    %v1912 = vunpack.c.h.b16 %v1730
    %v1913 = vunpack.c.l.b16 %v1731
    %v1914 = vunpack.c.h.b16 %v1731
    %v1915 = vunpack.c.l.b16 %v1732
    %v1916 = vunpack.c.h.b16 %v1732
    %v1917 = vunpack.c.l.b16 %v1733
    %v1918 = vunpack.c.h.b16 %v1733
    %v1919 = vunpack.c.l.b16 %v1734
    %v1920 = vunpack.c.h.b16 %v1734
    %v1921 = vunpack.c.l.b16 %v1735
    %v1922 = vunpack.c.h.b16 %v1735
    %v1923 = vunpack.c.l.b16 %v1736
    %v1924 = vunpack.c.h.b16 %v1736
    %v1925 = vunpack.c.l.b16 %v1737
    %v1926 = vunpack.c.h.b16 %v1737
    %v1927 = vunpack.c.l.b16 %v1738
    %v1928 = vunpack.c.h.b16 %v1738
    %v1929 = vunpack.c.l.b16 %v1739
    %v1930 = vunpack.c.h.b16 %v1739
    %v1931 = vunpack.c.l.b16 %v1740
    %v1932 = vunpack.c.h.b16 %v1740
    %v1933 = vunpack.c.l.b16 %v1741
    %v1934 = vunpack.c.h.b16 %v1741
    %v1935 = vunpack.c.l.b16 %v1742
    %v1936 = vunpack.c.h.b16 %v1742
    %v1937 = vunpack.c.l.b16 %v1743
    %v1938 = vunpack.c.h.b16 %v1743
    %v1939 = vunpack.c.l.b16 %v1744
    %v1940 = vunpack.c.h.b16 %v1744
    %v1941 = vunpack.c.l.b16 %v1745
    %v1942 = vunpack.c.h.b16 %v1745
    %v1943 = vunpack.c.l.b16 %v1746
    %v1944 = vunpack.c.h.b16 %v1746
    %v1945 = vunpack.c.l.b16 %v1747
    %v1946 = vunpack.c.h.b16 %v1747
    %v1947 = vunpack.c.l.b16 %v1748
    %v1948 = vunpack.c.h.b16 %v1748
    %v1949 = vunpack.c.l.b16 %v1749
    %v1950 = vunpack.c.h.b16 %v1749
    %v1951 = vunpack.c.l.b16 %v1750
    %v1952 = vunpack.c.h.b16 %v1750
    %v1953 = vunpack.c.l.b16 %v1751
    %v1954 = vunpack.c.h.b16 %v1751
    %v1955 = vunpack.c.l.b16 %v1752
    %v1956 = vunpack.c.h.b16 %v1752
    %v1957 = vunpack.c.l.b16 %v1753
    %v1958 = vunpack.c.h.b16 %v1753
    %v1959 = vunpack.c.l.b16 %v1754
    %v1960 = vunpack.c.h.b16 %v1754
    %v1961 = vunpack.c.l.b16 %v1755
    %v1962 = vunpack.c.h.b16 %v1755
    %v1963 = vunpack.c.l.b16 %v1756
    %v1964 = vunpack.c.h.b16 %v1756
    %v1965 = vunpack.c.l.b16 %v1757
    %v1966 = vunpack.c.h.b16 %v1757
    %v1967 = vunpack.c.l.b16 %v1758
    %v1968 = vunpack.c.h.b16 %v1758
    %v1969 = vunpack.c.l.b16 %v1759
    %v1970 = vunpack.c.h.b16 %v1759
    %v1971 = vunpack.c.l.b16 %v1760
    %v1972 = vunpack.c.h.b16 %v1760
    %v1973 = vunpack.c.l.b16 %v1761
    %v1974 = vunpack.c.h.b16 %v1761
    %v1975 = vpack.c.b16 %v1849, %v1847
    %v1976 = vpack.c.b16 %v1850, %v1848
    %v1977 = vpack.c.b16 %v1853, %v1851
    %v1978 = vpack.c.b16 %v1854, %v1852
    %v1979 = vpack.c.b16 %v1857, %v1855
    %v1980 = vpack.c.b16 %v1858, %v1856
    %v1981 = vpack.c.b16 %v1861, %v1859
    %v1982 = vpack.c.b16 %v1862, %v1860
    %v1983 = vpack.c.b16 %v1865, %v1863
    %v1984 = vpack.c.b16 %v1866, %v1864
    %v1985 = vpack.c.b16 %v1869, %v1867
    %v1986 = vpack.c.b16 %v1870, %v1868
    %v1987 = vpack.c.b16 %v1873, %v1871
    %v1988 = vpack.c.b16 %v1874, %v1872
    %v1989 = vpack.c.b16 %v1877, %v1875
    %v1990 = vpack.c.b16 %v1878, %v1876
    %v1991 = vpack.c.b16 %v1881, %v1879
    %v1992 = vpack.c.b16 %v1882, %v1880
    %v1993 = vpack.c.b16 %v1885, %v1883
    %v1994 = vpack.c.b16 %v1886, %v1884
    %v1995 = vpack.c.b16 %v1889, %v1887
    %v1996 = vpack.c.b16 %v1890, %v1888
    %v1997 = vpack.c.b16 %v1893, %v1891
    %v1998 = vpack.c.b16 %v1894, %v1892
    %v1999 = vpack.c.b16 %v1897, %v1895
    %v2000 = vpack.c.b16 %v1898, %v1896
    %v2001 = vpack.c.b16 %v1901, %v1899
    %v2002 = vpack.c.b16 %v1902, %v1900
    %v2003 = vpack.c.b16 %v1905, %v1903
    %v2004 = vpack.c.b16 %v1906, %v1904
    %v2005 = vpack.c.b16 %v1909, %v1907
    %v2006 = vpack.c.b16 %v1910, %v1908
    %v2007 = vpack.c.b16 %v1913, %v1911
    %v2008 = vpack.c.b16 %v1914, %v1912
    %v2009 = vpack.c.b16 %v1917, %v1915
    %v2010 = vpack.c.b16 %v1918, %v1916
    %v2011 = vpack.c.b16 %v1921, %v1919
    %v2012 = vpack.c.b16 %v1922, %v1920
    %v2013 = vpack.c.b16 %v1925, %v1923
    %v2014 = vpack.c.b16 %v1926, %v1924
    %v2015 = vpack.c.b16 %v1929, %v1927
    %v2016 = vpack.c.b16 %v1930, %v1928
    %v2017 = vpack.c.b16 %v1933, %v1931
    %v2018 = vpack.c.b16 %v1934, %v1932
    %v2019 = vpack.c.b16 %v1937, %v1935
    %v2020 = vpack.c.b16 %v1938, %v1936
    %v2021 = vpack.c.b16 %v1941, %v1939
    %v2022 = vpack.c.b16 %v1942, %v1940
    %v2023 = vpack.c.b16 %v1945, %v1943
    %v2024 = vpack.c.b16 %v1946, %v1944
    %v2025 = vpack.c.b16 %v1949, %v1947
    %v2026 = vpack.c.b16 %v1950, %v1948
    %v2027 = vpack.c.b16 %v1953, %v1951
    %v2028 = vpack.c.b16 %v1954, %v1952
    %v2029 = vpack.c.b16 %v1957, %v1955
    %v2030 = vpack.c.b16 %v1958, %v1956
    %v2031 = vpack.c.b16 %v1961, %v1959
    %v2032 = vpack.c.b16 %v1962, %v1960
    %v2033 = vpack.c.b16 %v1965, %v1963
    %v2034 = vpack.c.b16 %v1966, %v1964
    %v2035 = vpack.c.b16 %v1969, %v1967
    %v2036 = vpack.c.b16 %v1970, %v1968
    %v2037 = vpack.c.b16 %v1973, %v1971
    %v2038 = vpack.c.b16 %v1974, %v1972
    %2103 = vmatprep.subr.bf16.mxu0 %v1976
    %2104 = vmatpush1.bf16.msra.mxu0 %v1975
    %2105 = vmatprep.subr.bf16.mxu0 %v1978
    %2106 = vmatpush1.bf16.msra.mxu0 %v1977
    %2107 = vmatprep.subr.bf16.mxu0 %v1980
    %2108 = vmatpush1.bf16.msra.mxu0 %v1979
    %2109 = vmatprep.subr.bf16.mxu0 %v1982
    %2110 = vmatpush1.bf16.msra.mxu0 %v1981
    %2111 = vmatprep.subr.bf16.mxu0 %v1984
    %2112 = vmatpush1.bf16.msra.mxu0 %v1983
    %2113 = vmatprep.subr.bf16.mxu0 %v1986
    %2114 = vmatpush1.bf16.msra.mxu0 %v1985
    %2115 = vmatprep.subr.bf16.mxu0 %v1988
    %2116 = vmatpush1.bf16.msra.mxu0 %v1987
    %2117 = vmatprep.subr.bf16.mxu0 %v1990
    %2118 = vmatpush1.bf16.msra.mxu0 %v1989
    %2119 = vmatprep.subr.bf16.mxu0 %v1992
    %2120 = vmatpush1.bf16.msra.mxu0 %v1991
    %2121 = vmatprep.subr.bf16.mxu0 %v1994
    %2122 = vmatpush1.bf16.msra.mxu0 %v1993
    %2123 = vmatprep.subr.bf16.mxu0 %v1996
    %2124 = vmatpush1.bf16.msra.mxu0 %v1995
    %2125 = vmatprep.subr.bf16.mxu0 %v1998
    %2126 = vmatpush1.bf16.msra.mxu0 %v1997
    %2127 = vmatprep.subr.bf16.mxu0 %v2000
    %2128 = vmatpush1.bf16.msra.mxu0 %v1999
    %2129 = vmatprep.subr.bf16.mxu0 %v2002
    %2130 = vmatpush1.bf16.msra.mxu0 %v2001
    %2131 = vmatprep.subr.bf16.mxu0 %v2004
    %2132 = vmatpush1.bf16.msra.mxu0 %v2003
    %2133 = vmatprep.subr.bf16.mxu0 %v2006
    %2134 = vmatpush1.bf16.msra.mxu0 %v2005
    %2135 = vmatprep.mubr.bf16.mxu0 %v1695
    %2136 = vmatmul.mubr.bf16.gmra.mrb[0].mxu0 %v1694
    %v2137 = vpop.f32.mrb[0].mxu0
    %v2138 = vadd.f32 %v1778, %v2137
    %v2139 = vpop.f32.mrb[0].mxu0
    %v2140 = vadd.f32 %v1782, %v2139
    %v2141 = vpop.f32.mrb[0].mxu0
    %v2142 = vadd.f32 %v1778, %v2141
    %v2143 = vpop.f32.mrb[0].mxu0
    %v2144 = vadd.f32 %v1782, %v2143
    %2145 = vdwg.mxu0
    %2146 = vmatprep.subr.bf16.mxu0 %v2008
    %2147 = vmatpush1.bf16.msra.mxu0 %v2007
    %2148 = vmatprep.subr.bf16.mxu0 %v2010
    %2149 = vmatpush1.bf16.msra.mxu0 %v2009
    %2150 = vmatprep.subr.bf16.mxu0 %v2012
    %2151 = vmatpush1.bf16.msra.mxu0 %v2011
    %2152 = vmatprep.subr.bf16.mxu0 %v2014
    %2153 = vmatpush1.bf16.msra.mxu0 %v2013
    %2154 = vmatprep.subr.bf16.mxu0 %v2016
    %2155 = vmatpush1.bf16.msra.mxu0 %v2015
    %2156 = vmatprep.subr.bf16.mxu0 %v2018
    %2157 = vmatpush1.bf16.msra.mxu0 %v2017
    %2158 = vmatprep.subr.bf16.mxu0 %v2020
    %2159 = vmatpush1.bf16.msra.mxu0 %v2019
    %2160 = vmatprep.subr.bf16.mxu0 %v2022
    %2161 = vmatpush1.bf16.msra.mxu0 %v2021
    %2162 = vmatprep.subr.bf16.mxu0 %v2024
    %2163 = vmatpush1.bf16.msra.mxu0 %v2023
    %2164 = vmatprep.subr.bf16.mxu0 %v2026
    %2165 = vmatpush1.bf16.msra.mxu0 %v2025
    %2166 = vmatprep.subr.bf16.mxu0 %v2028
    %2167 = vmatpush1.bf16.msra.mxu0 %v2027
    %2168 = vmatprep.subr.bf16.mxu0 %v2030
    %2169 = vmatpush1.bf16.msra.mxu0 %v2029
    %2170 = vmatprep.subr.bf16.mxu0 %v2032
    %2171 = vmatpush1.bf16.msra.mxu0 %v2031
    %2172 = vmatprep.subr.bf16.mxu0 %v2034
    %2173 = vmatpush1.bf16.msra.mxu0 %v2033
    %2174 = vmatprep.subr.bf16.mxu0 %v2036
    %2175 = vmatpush1.bf16.msra.mxu0 %v2035
    %2176 = vmatprep.subr.bf16.mxu0 %v2038
    %2177 = vmatpush1.bf16.msra.mxu0 %v2037
    %2178 = vmatprep.mubr.bf16.mxu0 %v1697
    %2179 = vmatmul.mubr.bf16.gmra.mrb[0].mxu0 %v1696
    %v2180 = vpop.f32.mrb[0].mxu0
    %v2181 = vadd.f32 %v2138, %v2180
    %v2182 = vpop.f32.mrb[0].mxu0
    %v2183 = vadd.f32 %v2140, %v2182
    %v2184 = vpop.f32.mrb[0].mxu0
    %v2185 = vadd.f32 %v2142, %v2184
    %v2186 = vpop.f32.mrb[0].mxu0
    %v2187 = vadd.f32 %v2144, %v2186
    %2188 = vdwg.mxu0
    %v2189 = vmax.f32 %v2181, 0.0
    %v2190 = vmax.f32 %v2183, 0.0
    %v2191 = vmax.f32 %v2185, 0.0
    %v2192 = vmax.f32 %v2187, 0.0
    %v2193 = vpack.c.bf16 %v2191, %v2189
    %v2194 = vpack.c.bf16 %v2192, %v2190
    %v2195 = vld [vmem:[#allocation8] sm:$0xf]
    %v2196 = vld [vmem:[#allocation8 + $0x4] sm:$0xf]
    %v2197 = vld [vmem:[#allocation8 + $0x8] sm:$0xf]
    %v2198 = vld [vmem:[#allocation8 + $0xc] sm:$0xf]
    %v2199 = vld [vmem:[#allocation8 + $0x10] sm:$0xf]
    %v2200 = vld [vmem:[#allocation8 + $0x14] sm:$0xf]
    %v2201 = vld [vmem:[#allocation8 + $0x18] sm:$0xf]
    %v2202 = vld [vmem:[#allocation8 + $0x1c] sm:$0xf]
    %v2203 = vld [vmem:[#allocation8 + $0x20] sm:$0xf]
    %v2204 = vld [vmem:[#allocation8 + $0x24] sm:$0xf]
    %v2205 = vld [vmem:[#allocation8 + $0x28] sm:$0xf]
    %v2206 = vld [vmem:[#allocation8 + $0x2c] sm:$0xf]
    %v2207 = vld [vmem:[#allocation8 + $0x30] sm:$0xf]
    %v2208 = vld [vmem:[#allocation8 + $0x34] sm:$0xf]
    %v2209 = vld [vmem:[#allocation8 + $0x38] sm:$0xf]
    %v2210 = vld [vmem:[#allocation8 + $0x3c] sm:$0xf]
    %v2211 = vld [vmem:[#allocation8 + $0x40] sm:$0xf]
    %v2212 = vld [vmem:[#allocation8 + $0x44] sm:$0xf]
    %v2213 = vld [vmem:[#allocation8 + $0x48] sm:$0xf]
    %v2214 = vld [vmem:[#allocation8 + $0x4c] sm:$0xf]
    %v2215 = vld [vmem:[#allocation8 + $0x50] sm:$0xf]
    %v2216 = vld [vmem:[#allocation8 + $0x54] sm:$0xf]
    %v2217 = vld [vmem:[#allocation8 + $0x58] sm:$0xf]
    %v2218 = vld [vmem:[#allocation8 + $0x5c] sm:$0xf]
    %v2219 = vld [vmem:[#allocation8 + $0x60] sm:$0xf]
    %v2220 = vld [vmem:[#allocation8 + $0x64] sm:$0xf]
    %v2221 = vld [vmem:[#allocation8 + $0x68] sm:$0xf]
    %v2222 = vld [vmem:[#allocation8 + $0x6c] sm:$0xf]
    %v2223 = vld [vmem:[#allocation8 + $0x70] sm:$0xf]
    %v2224 = vld [vmem:[#allocation8 + $0x74] sm:$0xf]
    %v2225 = vld [vmem:[#allocation8 + $0x78] sm:$0xf]
    %v2226 = vld [vmem:[#allocation8 + $0x7c] sm:$0xf]
    %v2227 = vld [vmem:[%s6] sm:$0x1]
    %v2228 = vunpack.c.l.bf16 %v2227
    %v2229 = vlaneseq
    %v2230 = vshrl.u32 %v2229, 7
    %v2231 = vsub.s32 0, %v2230
    %v2232 = vrot.slane %v2228, %v2231
    %v2265 = vunpack.c.l.b16 %v2195
    %v2266 = vunpack.c.l.b16 %v2196
    %v2267 = vunpack.c.l.b16 %v2197
    %v2268 = vunpack.c.l.b16 %v2198
    %v2269 = vunpack.c.l.b16 %v2199
    %v2270 = vunpack.c.l.b16 %v2200
    %v2271 = vunpack.c.l.b16 %v2201
    %v2272 = vunpack.c.l.b16 %v2202
    %v2273 = vunpack.c.l.b16 %v2203
    %v2274 = vunpack.c.l.b16 %v2204
    %v2275 = vunpack.c.l.b16 %v2205
    %v2276 = vunpack.c.l.b16 %v2206
    %v2277 = vunpack.c.l.b16 %v2207
    %v2278 = vunpack.c.l.b16 %v2208
    %v2279 = vunpack.c.l.b16 %v2209
    %v2280 = vunpack.c.l.b16 %v2210
    %v2281 = vunpack.c.l.b16 %v2211
    %v2282 = vunpack.c.l.b16 %v2212
    %v2283 = vunpack.c.l.b16 %v2213
    %v2284 = vunpack.c.l.b16 %v2214
    %v2285 = vunpack.c.l.b16 %v2215
    %v2286 = vunpack.c.l.b16 %v2216
    %v2287 = vunpack.c.l.b16 %v2217
    %v2288 = vunpack.c.l.b16 %v2218
    %v2289 = vunpack.c.l.b16 %v2219
    %v2290 = vunpack.c.l.b16 %v2220
    %v2291 = vunpack.c.l.b16 %v2221
    %v2292 = vunpack.c.l.b16 %v2222
    %v2293 = vunpack.c.l.b16 %v2223
    %v2294 = vunpack.c.l.b16 %v2224
    %v2295 = vunpack.c.l.b16 %v2225
    %v2296 = vunpack.c.l.b16 %v2226
    %v2297 = vpack.c.b16 %v2266, %v2265
    %v2298 = vpack.c.b16 %v2268, %v2267
    %v2299 = vpack.c.b16 %v2270, %v2269
    %v2300 = vpack.c.b16 %v2272, %v2271
    %v2301 = vpack.c.b16 %v2274, %v2273
    %v2302 = vpack.c.b16 %v2276, %v2275
    %v2303 = vpack.c.b16 %v2278, %v2277
    %v2304 = vpack.c.b16 %v2280, %v2279
    %v2305 = vpack.c.b16 %v2282, %v2281
    %v2306 = vpack.c.b16 %v2284, %v2283
    %v2307 = vpack.c.b16 %v2286, %v2285
    %v2308 = vpack.c.b16 %v2288, %v2287
    %v2309 = vpack.c.b16 %v2290, %v2289
    %v2310 = vpack.c.b16 %v2292, %v2291
    %v2311 = vpack.c.b16 %v2294, %v2293
    %v2312 = vpack.c.b16 %v2296, %v2295
    %2329 = vmatprep.subr.bf16.mxu0 0
    %2330 = vmatpush1.bf16.msra.mxu0 %v2297
    %2331 = vmatprep.subr.bf16.mxu0 0
    %2332 = vmatpush1.bf16.msra.mxu0 %v2298
    %2333 = vmatprep.subr.bf16.mxu0 0
    %2334 = vmatpush1.bf16.msra.mxu0 %v2299
    %2335 = vmatprep.subr.bf16.mxu0 0
    %2336 = vmatpush1.bf16.msra.mxu0 %v2300
    %2337 = vmatprep.subr.bf16.mxu0 0
    %2338 = vmatpush1.bf16.msra.mxu0 %v2301
    %2339 = vmatprep.subr.bf16.mxu0 0
    %2340 = vmatpush1.bf16.msra.mxu0 %v2302
    %2341 = vmatprep.subr.bf16.mxu0 0
    %2342 = vmatpush1.bf16.msra.mxu0 %v2303
    %2343 = vmatprep.subr.bf16.mxu0 0
    %2344 = vmatpush1.bf16.msra.mxu0 %v2304
    %2345 = vmatprep.subr.bf16.mxu0 0
    %2346 = vmatpush1.bf16.msra.mxu0 %v2305
    %2347 = vmatprep.subr.bf16.mxu0 0
    %2348 = vmatpush1.bf16.msra.mxu0 %v2306
    %2349 = vmatprep.subr.bf16.mxu0 0
    %2350 = vmatpush1.bf16.msra.mxu0 %v2307
    %2351 = vmatprep.subr.bf16.mxu0 0
    %2352 = vmatpush1.bf16.msra.mxu0 %v2308
    %2353 = vmatprep.subr.bf16.mxu0 0
    %2354 = vmatpush1.bf16.msra.mxu0 %v2309
    %2355 = vmatprep.subr.bf16.mxu0 0
    %2356 = vmatpush1.bf16.msra.mxu0 %v2310
    %2357 = vmatprep.subr.bf16.mxu0 0
    %2358 = vmatpush1.bf16.msra.mxu0 %v2311
    %2359 = vmatprep.subr.bf16.mxu0 0
    %2360 = vmatpush1.bf16.msra.mxu0 %v2312
    %2361 = vmatprep.mubr.bf16.mxu0 %v2194
    %2362 = vmatmul.mubr.bf16.gmra.mrb[0].mxu0 %v2193
    %v2363 = vpop.f32.mrb[0].mxu0
    %v2364 = vadd.f32 %v2232, %v2363
    %v2365 = vpop.f32.mrb[0].mxu0
    %v2366 = vpop.f32.mrb[0].mxu0
    %v2367 = vadd.f32 %v2232, %v2366
    %v2368 = vpop.f32.mrb[0].mxu0
    %2369 = vdwg.mxu0
    %v2370 = vmax.f32 %v2364, 0.0
    %v2371 = vmax.f32 %v2367, 0.0
    %v2372 = vpack.c.bf16 %v2371, %v2370
    %v2373 = vld [vmem:[#allocation10] sm:$0xf]
    %v2374 = vld [vmem:[#allocation10 + $0x4] sm:$0xf]
    %v2375 = vld [vmem:[#allocation10 + $0x8] sm:$0xf]
    %v2376 = vld [vmem:[#allocation10 + $0xc] sm:$0xf]
    %v2377 = vld [vmem:[#allocation10 + $0x10] sm:$0xf]
    %v2378 = vld [vmem:[#allocation10 + $0x14] sm:$0xf]
    %v2379 = vld [vmem:[#allocation10 + $0x18] sm:$0xf]
    %v2380 = vld [vmem:[#allocation10 + $0x1c] sm:$0xf]
    %v2381 = vld [vmem:[#allocation10 + $0x20] sm:$0xf]
    %v2382 = vld [vmem:[#allocation10 + $0x24] sm:$0xf]
    %v2383 = vld [vmem:[#allocation10 + $0x28] sm:$0xf]
    %v2384 = vld [vmem:[#allocation10 + $0x2c] sm:$0xf]
    %v2385 = vld [vmem:[#allocation10 + $0x30] sm:$0xf]
    %v2386 = vld [vmem:[#allocation10 + $0x34] sm:$0xf]
    %v2387 = vld [vmem:[#allocation10 + $0x38] sm:$0xf]
    %v2388 = vld [vmem:[#allocation10 + $0x3c] sm:$0xf]
    %v2389 = vld [vmem:[%s8] sm:$0x1]
    %v2390 = vunpack.c.l.bf16 %v2389
    %v2391 = vlaneseq
    %v2392 = vshrl.u32 %v2391, 7
    %v2393 = vsub.s32 0, %v2392
    %v2394 = vrot.slane %v2390, %v2393
    %v2411 = vunpack.c.l.b16 %v2373
    %v2412 = vunpack.c.l.b16 %v2374
    %v2413 = vunpack.c.l.b16 %v2375
    %v2414 = vunpack.c.l.b16 %v2376
    %v2415 = vunpack.c.l.b16 %v2377
    %v2416 = vunpack.c.l.b16 %v2378
    %v2417 = vunpack.c.l.b16 %v2379
    %v2418 = vunpack.c.l.b16 %v2380
    %v2419 = vunpack.c.l.b16 %v2381
    %v2420 = vunpack.c.l.b16 %v2382
    %v2421 = vunpack.c.l.b16 %v2383
    %v2422 = vunpack.c.l.b16 %v2384
    %v2423 = vunpack.c.l.b16 %v2385
    %v2424 = vunpack.c.l.b16 %v2386
    %v2425 = vunpack.c.l.b16 %v2387
    %v2426 = vunpack.c.l.b16 %v2388
    %v2427 = vpack.c.b16 %v2412, %v2411
    %v2428 = vpack.c.b16 %v2414, %v2413
    %v2429 = vpack.c.b16 %v2416, %v2415
    %v2430 = vpack.c.b16 %v2418, %v2417
    %v2431 = vpack.c.b16 %v2420, %v2419
    %v2432 = vpack.c.b16 %v2422, %v2421
    %v2433 = vpack.c.b16 %v2424, %v2423
    %v2434 = vpack.c.b16 %v2426, %v2425
    %2443 = vmatprep.subr.bf16.mxu0 0
    %2444 = vmatpush1.bf16.msra.mxu0 %v2427
    %2445 = vmatprep.subr.bf16.mxu0 0
    %2446 = vmatpush1.bf16.msra.mxu0 %v2428
    %2447 = vmatprep.subr.bf16.mxu0 0
    %2448 = vmatpush1.bf16.msra.mxu0 %v2429
    %2449 = vmatprep.subr.bf16.mxu0 0
    %2450 = vmatpush1.bf16.msra.mxu0 %v2430
    %2451 = vmatprep.subr.bf16.mxu0 0
    %2452 = vmatpush1.bf16.msra.mxu0 %v2431
    %2453 = vmatprep.subr.bf16.mxu0 0
    %2454 = vmatpush1.bf16.msra.mxu0 %v2432
    %2455 = vmatprep.subr.bf16.mxu0 0
    %2456 = vmatpush1.bf16.msra.mxu0 %v2433
    %2457 = vmatprep.subr.bf16.mxu0 0
    %2458 = vmatpush1.bf16.msra.mxu0 %v2434
    %2459 = vmatprep.subr.bf16.mxu0 0
    %2460 = vmatpush1.bf16.msra.mxu0 0
    %2461 = vmatprep.subr.bf16.mxu0 0
    %2462 = vmatpush1.bf16.msra.mxu0 0
    %2463 = vmatprep.subr.bf16.mxu0 0
    %2464 = vmatpush1.bf16.msra.mxu0 0
    %2465 = vmatprep.subr.bf16.mxu0 0
    %2466 = vmatpush1.bf16.msra.mxu0 0
    %2467 = vmatprep.subr.bf16.mxu0 0
    %2468 = vmatpush1.bf16.msra.mxu0 0
    %2469 = vmatprep.subr.bf16.mxu0 0
    %2470 = vmatpush1.bf16.msra.mxu0 0
    %2471 = vmatprep.subr.bf16.mxu0 0
    %2472 = vmatpush1.bf16.msra.mxu0 0
    %2473 = vmatprep.subr.bf16.mxu0 0
    %2474 = vmatpush1.bf16.msra.mxu0 0
    %2475 = vmatprep.mubr.bf16.mxu0 0
    %2476 = vmatmul.mubr.bf16.gmra.mrb[0].mxu0 %v2372
    %v2477 = vpop.f32.mrb[0].mxu0
    %v2478 = vadd.f32 %v2394, %v2477
    %v2479 = vpop.f32.mrb[0].mxu0
    %v2480 = vpop.f32.mrb[0].mxu0
    %v2481 = vadd.f32 %v2394, %v2480
    %v2482 = vpop.f32.mrb[0].mxu0
    %2483 = vdwg.mxu0
    %v2484 = vpack.c.bf16 %v2481, %v2478
    %v2486 = vunpack.c.l.b16 %v2484
    %v2487 = vunpack.c.h.b16 %v2484
    %v2488 = vpack.c.b16 %v2486, %v2486
    %v2489 = vpack.c.b16 %v2487, %v2487
    %2492 = vst [vmem:[#allocation11] sm:$0xf] %v2488
    %2493 = vst [vmem:[#allocation11 + $0x4] sm:$0xf] %v2489
    // Predicated region
    $region58: #{tpu_custom_call.1} parent=1 // pred_check
      _
    $region59: #{tpu_custom_call.1} parent=1 // pred_check_branch
      %2495 = sbr.rel (0) target = $region61
    $region60: #{tpu_custom_call.1} parent=1 // pred_region
      %s2497 = ssub.s32 128, 128
      %2498 = vsyncadd [#allocation4], %s2497
      %s2499 = sshll.u32 [#allocation11], 4
      %s2500 = int_to_ptr.vmem [resolvable:$true] %s2499
      %2505 = dma.vmem_to_hbm [thread:$0]  %s2500, 128, %s9, [#allocation4], 64, 64, 4
    $region61: #{tpu_custom_call.1} parent=1 // pred_fallthru
      _
    // Predicated region
    $region62: #{tpu_custom_call.1} parent=1 // pred_check
      _
    $region63: #{tpu_custom_call.1} parent=1 // pred_check_branch
      %2507 = sbr.rel (0) target = $region65
    $region64: #{tpu_custom_call.1} parent=1 // pred_region
      %2508 = dma.done [#allocation4], 128
    $region65: #{tpu_custom_call.1} parent=1 // pred_fallthru
      _
    %2509 = vsyncpa [#allocation3], 1
    %2510 = vsyncpa [#allocation6], 1
    %2511 = vsyncpa [#allocation9], 1
    %2512 = vsyncpa [#allocation4], 1

</llo_original>
